<compile_context>
chip_gen: v6e
topology: v6e:2x2x1
jax: 0.10.0
libtpu: 0.0.40
codegen_flags: <defaults>
</compile_context>

<pallas_src>
import math
import numpy as np
import jax
import jax.numpy as jnp
from jax.experimental import pallas as pl
from jax.experimental.pallas import tpu as pltpu


def _round_up(x, m):
    return ((x + m - 1) // m) * m


# ----------------------------- Pallas kernel ------------------------------ #
def _conv_lstm_kernel(p_ref, w_ref, b_ref, v_ref, c_ref, h_out_ref, c_out_ref):
    # p_ref : (1, TILE_S, Kp)   bf16   fused [px | ph] patches (zero-padded K)
    # w_ref : (Kp, 4*Fp)        bf16   fused gate weights [f | i | o | c]
    # b_ref : (1, 4*Fp)         f32    combined conv_x + conv_h bias per gate
    # v_ref : (3, TILE_S, Fp)   f32    peephole V_f / V_i / V_o for this spatial tile
    # c_ref : (1, TILE_S, Fp)   f32    previous cell state
    Fp = c_ref.shape[-1]

    p = p_ref[0]                       # (TILE_S, Kp)
    w = w_ref[...]                     # (Kp, 4*Fp)
    bias = b_ref[...]                  # (1, 4*Fp)  -- single load, broadcast-add

    # one fused MXU matmul, f32 accumulate, lane-dense output (4*Fp multiple of 128)
    pre = jnp.dot(p, w, preferred_element_type=jnp.float32) + bias   # (TILE_S, 4*Fp)

    c_prev = c_ref[0]                  # (TILE_S, Fp)  f32
    v_f = v_ref[0]                     # hoisted single loads
    v_i = v_ref[1]
    v_o = v_ref[2]

    # lane-aligned gate slices (Fp is a multiple of 128)
    f_t = jax.nn.sigmoid(pre[:, 0 * Fp:1 * Fp] + c_prev * v_f)
    i_t = jax.nn.sigmoid(pre[:, 1 * Fp:2 * Fp] + c_prev * v_i)
    o_t = jax.nn.sigmoid(pre[:, 2 * Fp:3 * Fp] + c_prev * v_o)
    c_hat = jnp.tanh(pre[:, 3 * Fp:4 * Fp])

    c_t = f_t * c_prev + i_t * c_hat
    h_t = o_t * jnp.tanh(c_t)

    h_out_ref[0] = h_t
    c_out_ref[0] = c_t


# ------------------------------ JAX glue ---------------------------------- #
def _im2col(x, kh, kw, stride):
    """x: (B, C, H, W) -> (B, Ho*Wo, C*kh*kw); column order (c, i, j) matches
    PyTorch conv weight.view(F, C*kh*kw)."""
    B, C, H, W = x.shape
    Ho = (H - kh) // stride + 1
    Wo = (W - kw) // stride + 1
    cols = []
    for c in range(C):
        for i in range(kh):
            for j in range(kw):
                cols.append(x[:, c, i:i + stride * Ho:stride, j:j + stride * Wo:stride])
    patches = jnp.stack(cols, axis=-1)                 # (B, Ho, Wo, C*kh*kw)
    return patches.reshape(B, Ho * Wo, C * kh * kw), Ho, Wo


def conv2d_lstm_cell_forward(params, X_t, h_prev, c_prev, *, kernel, stride):
    kh, kw = kernel
    B, C_in, H, W = X_t.shape
    F = params["wx_f"].shape[0]

    # im2col for the 4 x-convolutions (valid, stride s)
    px, Ho, Wo = _im2col(X_t, kh, kw, stride)                          # (B, S, Kx)
    # im2col for the 4 h-convolutions (padding=2, stride 1) — keeps (Ho, Wo) for 5x5
    h_pad = jnp.pad(h_prev, ((0, 0), (0, 0), (2, 2), (2, 2)))
    ph, Hh, Wh = _im2col(h_pad, kh, kw, 1)                             # (B, S, Kh)
    assert (Hh, Wh) == (Ho, Wo), "state spatial shape must match conv output"

    S = Ho * Wo
    Kx = C_in * kh * kw
    Kh = F * kh * kw

    # ---- padded, lane-aligned layout -------------------------------------
    Fp = _round_up(max(F, 128), 128)               # lane-dense per-gate width
    Kp = _round_up(Kx + Kh, 128)                   # aligned contraction dim
    TILE_S = min(512, _round_up(S, 8))             # rows per tile (multiple of 8)
    S_pad = _round_up(S, TILE_S)

    # fused patches [px | ph], zero-padded, bf16 matmul operands
    p_cat = jnp.zeros((B, S_pad, Kp), jnp.float32)
    p_cat = p_cat.at[:, :S, :Kx].set(px)
    p_cat = p_cat.at[:, :S, Kx:Kx + Kh].set(ph)
    p_cat = p_cat.astype(jnp.bfloat16)

    # fused gate weights (Kp, 4*Fp), gate order f,i,o,c
    W_full = jnp.zeros((Kp, 4 * Fp), jnp.float32)
    bias = jnp.zeros((1, 4 * Fp), jnp.float32)
    for gi, g in enumerate("fioc"):
        wx_g = params["wx_" + g].reshape(F, -1).T          # (Kx, F)
        wh_g = params["wh_" + g].reshape(F, -1).T          # (Kh, F)
        W_full = W_full.at[:Kx, gi * Fp:gi * Fp + F].set(wx_g)
        W_full = W_full.at[Kx:Kx + Kh, gi * Fp:gi * Fp + F].set(wh_g)
        bias = bias.at[0, gi * Fp:gi * Fp + F].set(params["bx_" + g] + params["bh_" + g])
    W_full = W_full.astype(jnp.bfloat16)

    # peephole V_f/V_i/V_o: (F, Ho, Wo) -> (3, S_pad, Fp), shared across batch
    v = jnp.zeros((3, S_pad, Fp), jnp.float32)
    for gi, g in enumerate("fio"):
        vg = jnp.transpose(params["V_" + g], (1, 2, 0)).reshape(S, F)
        v = v.at[gi, :S, :F].set(vg)

    # previous cell state -> (B, S_pad, Fp)
    c_nhwc = jnp.transpose(c_prev, (0, 2, 3, 1)).reshape(B, S, F)
    c_cat = jnp.zeros((B, S_pad, Fp), jnp.float32)
    c_cat = c_cat.at[:, :S, :F].set(c_nhwc)

    grid = (B, S_pad // TILE_S)

    h_out, c_out = pl.pallas_call(
        _conv_lstm_kernel,
        grid=grid,
        in_specs=[
            pl.BlockSpec((1, TILE_S, Kp), lambda b, s: (b, s, 0)),     # fused patches
            pl.BlockSpec((Kp, 4 * Fp), lambda b, s: (0, 0)),           # weights (resident)
            pl.BlockSpec((1, 4 * Fp), lambda b, s: (0, 0)),            # bias (resident)
            pl.BlockSpec((3, TILE_S, Fp), lambda b, s: (0, s, 0)),     # peephole V (no B bcast)
            pl.BlockSpec((1, TILE_S, Fp), lambda b, s: (b, s, 0)),     # c_prev
        ],
        out_specs=(
            pl.BlockSpec((1, TILE_S, Fp), lambda b, s: (b, s, 0)),     # h_t
            pl.BlockSpec((1, TILE_S, Fp), lambda b, s: (b, s, 0)),     # c_t
        ),
        out_shape=(jax.ShapeDtypeStruct((B, S_pad, Fp), jnp.float32),
                   jax.ShapeDtypeStruct((B, S_pad, Fp), jnp.float32)),
        input_output_aliases={4: 1},                                   # c_prev buffer -> c_t
        compiler_params=pltpu.CompilerParams(
            dimension_semantics=("parallel", "parallel"),
            vmem_limit_bytes=32 * 1024 * 1024),                        # fits v5e/v6e/v7x
    )(p_cat, W_full, bias, v, c_cat)

    # strip padding, back to PyTorch NCHW
    h_t = jnp.transpose(h_out[:, :S, :F].reshape(B, Ho, Wo, F), (0, 3, 1, 2))
    c_t = jnp.transpose(c_out[:, :S, :F].reshape(B, Ho, Wo, F), (0, 3, 1, 2))
    return h_t, c_t


# ------------------------- pure-JAX reference ------------------------------ #
def _conv2d_ref(x, w, b, stride, pad):
    out = jax.lax.conv_general_dilated(
        x, w, window_strides=(stride, stride),
        padding=[(pad, pad), (pad, pad)],
        dimension_numbers=("NCHW", "OIHW", "NCHW"))
    return out + b[None, :, None, None]


def conv2d_lstm_cell_ref(params, X_t, h_prev, c_prev, *, kernel, stride):
    def cx(g):
        return _conv2d_ref(X_t, params["wx_" + g], params["bx_" + g], stride, 0)

    def ch(g):
        return _conv2d_ref(h_prev, params["wh_" + g], params["bh_" + g], 1, 2)

    f_t = jax.nn.sigmoid(cx("f") + ch("f") + c_prev * params["V_f"][None])
    i_t = jax.nn.sigmoid(cx("i") + ch("i") + c_prev * params["V_i"][None])
    o_t = jax.nn.sigmoid(cx("o") + ch("o") + c_prev * params["V_o"][None])
    c_hat = jnp.tanh(cx("c") + ch("c"))
    c_t = f_t * c_prev + i_t * c_hat
    h_t = o_t * jnp.tanh(c_t)
    return h_t, c_t


# ---------------------------- param init ----------------------------------- #
def init_params(key, C_in, F, kh, kw, H, W, stride):
    Ho = (H - kh) // stride + 1
    Wo = (W - kw) // stride + 1
    ks = jax.random.split(key, 24)
    ki = iter(range(24))
    p = {}
    # conv weights/biases (PyTorch default-style uniform bounds), gate order f,i,o,c
    bx = 1.0 / math.sqrt(C_in * kh * kw)
    bh = 1.0 / math.sqrt(F * kh * kw)
    for g in "fioc":
        p["wx_" + g] = jax.random.uniform(ks[next(ki)], (F, C_in, kh, kw),
                                          jnp.float32, -bx, bx)
        p["bx_" + g] = jax.random.uniform(ks[next(ki)], (F,), jnp.float32, -bx, bx)
        p["wh_" + g] = jax.random.uniform(ks[next(ki)], (F, F, kh, kw),
                                          jnp.float32, -bh, bh)
        p["bh_" + g] = jax.random.uniform(ks[next(ki)], (F,), jnp.float32, -bh, bh)
    # V_f / V_i / V_o: xavier-normal-like peephole weights, shape (F, Ho, Wo)
    std = math.sqrt(2.0 / (Ho * Wo + Ho * Wo))
    for g in "fio":
        p["V_" + g] = std * jax.random.normal(ks[next(ki)], (F, Ho, Wo), jnp.float32)
    # b_f/b_i/b_o/b_c exist in the module but are never used in forward — omitted here.
    return p, Ho, Wo


# --------------------------------- main ------------------------------------ #
if __name__ == "__main__":
    B, C_in, H, W = 2, 4, 16, 16
    F_filters, kh, kw, stride = 8, 5, 5, 1   # 5x5 kernel keeps h-conv (pad=2) shape-consistent

    key = jax.random.PRNGKey(0)
    kp, kx, kh_key, kc = jax.random.split(key, 4)
    params, Ho, Wo = init_params(kp, C_in, F_filters, kh, kw, H, W, stride)

    X_t = jax.random.normal(kx, (B, C_in, H, W), jnp.float32)
    h_prev = jax.random.normal(kh_key, (B, F_filters, Ho, Wo), jnp.float32)
    c_prev = jax.random.normal(kc, (B, F_filters, Ho, Wo), jnp.float32)

    h_t, c_t = conv2d_lstm_cell_forward(params, X_t, h_prev, c_prev,
                                        kernel=(kh, kw), stride=stride)
    jax.block_until_ready((h_t, c_t))

    h_ref, c_ref = conv2d_lstm_cell_ref(params, X_t, h_prev, c_prev,
                                        kernel=(kh, kw), stride=stride)
    # bf16 matmul operands (f32 accumulate) => looser tolerance than pure-f32
    np.testing.assert_allclose(np.asarray(h_t), np.asarray(h_ref), atol=2e-2, rtol=2e-2)
    np.testing.assert_allclose(np.asarray(c_t), np.asarray(c_ref), atol=2e-2, rtol=2e-2)

    print("KERNEL_OK")
</pallas_src>

<mosaic_0001>
module attributes {stable_mosaic.version = 11 : i64} {
  func.func @_conv_lstm_kernel(%arg0: i32, %arg1: i32, %arg2: memref<1x144x384xbf16, #tpu.memory_space<vmem>>, %arg3: memref<384x512xbf16, #tpu.memory_space<vmem>>, %arg4: memref<1x512xf32, #tpu.memory_space<vmem>>, %arg5: memref<3x144x128xf32, #tpu.memory_space<vmem>>, %arg6: memref<1x144x128xf32, #tpu.memory_space<vmem>>, %arg7: memref<1x144x128xf32, #tpu.memory_space<vmem>>, %arg8: memref<1x144x128xf32, #tpu.memory_space<vmem>>) attributes {dimension_semantics = [#tpu.dimension_semantics<parallel>, #tpu.dimension_semantics<parallel>], iteration_bounds = array<i64: 2, 1>, scalar_prefetch = 0 : i64, scratch_operands = 0 : i64, tpu.core_type = #tpu.core_type<tc>, window_params = [{transform_indices = @transform_0, window_bounds = array<i64: 1, 144, 384>}, {pipeline_mode = #tpu.pipeline_mode<synchronous>, transform_indices = @transform_1, window_bounds = array<i64: 384, 512>}, {pipeline_mode = #tpu.pipeline_mode<synchronous>, transform_indices = @transform_2, window_bounds = array<i64: 1, 512>}, {transform_indices = @transform_3, window_bounds = array<i64: 3, 144, 128>}, {transform_indices = @transform_4, window_bounds = array<i64: 1, 144, 128>}, {transform_indices = @transform_5, window_bounds = array<i64: 1, 144, 128>}, {transform_indices = @transform_6, window_bounds = array<i64: 1, 144, 128>}]} {
    %c0 = arith.constant 0 : index
    %c0_0 = arith.constant 0 : index
    %c0_1 = arith.constant 0 : index
    %0 = vector.load %arg2[%c0, %c0_0, %c0_1] : memref<1x144x384xbf16, #tpu.memory_space<vmem>>, vector<1x144x384xbf16>
    %1 = vector.shape_cast %0 : vector<1x144x384xbf16> to vector<144x384xbf16>
    %c0_2 = arith.constant 0 : index
    %c0_3 = arith.constant 0 : index
    %2 = vector.load %arg3[%c0_2, %c0_3] : memref<384x512xbf16, #tpu.memory_space<vmem>>, vector<384x512xbf16>
    %c0_4 = arith.constant 0 : index
    %c0_5 = arith.constant 0 : index
    %3 = vector.load %arg4[%c0_4, %c0_5] : memref<1x512xf32, #tpu.memory_space<vmem>>, vector<1x512xf32>
    %cst = arith.constant dense<0.000000e+00> : vector<144x512xf32>
    %4 = tpu.matmul %1, %2, %cst {dimension_numbers = #tpu.dot_dimension_numbers<[1], [0], [0], [1], [0, 0, 1, 1], [], []>} : vector<144x384xbf16>, vector<384x512xbf16>, vector<144x512xf32> -> vector<144x512xf32>
    %5 = vector.broadcast %3 : vector<1x512xf32> to vector<144x512xf32>
    %6 = arith.addf %4, %5 : vector<144x512xf32>
    %c0_6 = arith.constant 0 : index
    %c0_7 = arith.constant 0 : index
    %c0_8 = arith.constant 0 : index
    %7 = vector.load %arg6[%c0_6, %c0_7, %c0_8] : memref<1x144x128xf32, #tpu.memory_space<vmem>>, vector<1x144x128xf32>
    %8 = vector.shape_cast %7 : vector<1x144x128xf32> to vector<144x128xf32>
    %c0_9 = arith.constant 0 : index
    %c0_10 = arith.constant 0 : index
    %c0_11 = arith.constant 0 : index
    %9 = vector.load %arg5[%c0_9, %c0_10, %c0_11] : memref<3x144x128xf32, #tpu.memory_space<vmem>>, vector<1x144x128xf32>
    %10 = vector.shape_cast %9 : vector<1x144x128xf32> to vector<144x128xf32>
    %c1 = arith.constant 1 : index
    %c0_12 = arith.constant 0 : index
    %c0_13 = arith.constant 0 : index
    %11 = vector.load %arg5[%c1, %c0_12, %c0_13] : memref<3x144x128xf32, #tpu.memory_space<vmem>>, vector<1x144x128xf32>
    %12 = vector.shape_cast %11 : vector<1x144x128xf32> to vector<144x128xf32>
    %c2 = arith.constant 2 : index
    %c0_14 = arith.constant 0 : index
    %c0_15 = arith.constant 0 : index
    %13 = vector.load %arg5[%c2, %c0_14, %c0_15] : memref<3x144x128xf32, #tpu.memory_space<vmem>>, vector<1x144x128xf32>
    %14 = vector.shape_cast %13 : vector<1x144x128xf32> to vector<144x128xf32>
    %15 = vector.extract_strided_slice %6 {offsets = [0, 0], sizes = [144, 128], strides = [1, 1]} : vector<144x512xf32> to vector<144x128xf32>
    %16 = arith.mulf %8, %10 : vector<144x128xf32>
    %17 = arith.addf %15, %16 : vector<144x128xf32>
    %18 = arith.negf %17 : vector<144x128xf32>
    %19 = math.exp %18 : vector<144x128xf32>
    %cst_16 = arith.constant 1.000000e+00 : f32
    %20 = vector.broadcast %cst_16 : f32 to vector<144x128xf32>
    %21 = arith.addf %20, %19 : vector<144x128xf32>
    %22 = arith.divf %20, %21 : vector<144x128xf32>
    %23 = vector.extract_strided_slice %6 {offsets = [0, 128], sizes = [144, 128], strides = [1, 1]} : vector<144x512xf32> to vector<144x128xf32>
    %24 = arith.mulf %8, %12 : vector<144x128xf32>
    %25 = arith.addf %23, %24 : vector<144x128xf32>
    %26 = arith.negf %25 : vector<144x128xf32>
    %27 = math.exp %26 : vector<144x128xf32>
    %cst_17 = arith.constant 1.000000e+00 : f32
    %28 = vector.broadcast %cst_17 : f32 to vector<144x128xf32>
    %29 = arith.addf %28, %27 : vector<144x128xf32>
    %30 = arith.divf %28, %29 : vector<144x128xf32>
    %31 = vector.extract_strided_slice %6 {offsets = [0, 256], sizes = [144, 128], strides = [1, 1]} : vector<144x512xf32> to vector<144x128xf32>
    %32 = arith.mulf %8, %14 : vector<144x128xf32>
    %33 = arith.addf %31, %32 : vector<144x128xf32>
    %34 = arith.negf %33 : vector<144x128xf32>
    %35 = math.exp %34 : vector<144x128xf32>
    %cst_18 = arith.constant 1.000000e+00 : f32
    %36 = vector.broadcast %cst_18 : f32 to vector<144x128xf32>
    %37 = arith.addf %36, %35 : vector<144x128xf32>
    %38 = arith.divf %36, %37 : vector<144x128xf32>
    %39 = vector.extract_strided_slice %6 {offsets = [0, 384], sizes = [144, 128], strides = [1, 1]} : vector<144x512xf32> to vector<144x128xf32>
    %40 = math.tanh %39 : vector<144x128xf32>
    %41 = arith.mulf %22, %8 : vector<144x128xf32>
    %42 = arith.mulf %30, %40 : vector<144x128xf32>
    %43 = arith.addf %41, %42 : vector<144x128xf32>
    %44 = math.tanh %43 : vector<144x128xf32>
    %45 = arith.mulf %38, %44 : vector<144x128xf32>
    %c0_19 = arith.constant 0 : index
    %c0_20 = arith.constant 0 : index
    %c0_21 = arith.constant 0 : index
    %46 = vector.load %arg7[%c0_19, %c0_20, %c0_21] : memref<1x144x128xf32, #tpu.memory_space<vmem>>, vector<1x144x128xf32>
    %47 = vector.shape_cast %46 : vector<1x144x128xf32> to vector<144x128xf32>
    %48 = vector.shape_cast %45 : vector<144x128xf32> to vector<1x144x128xf32>
    tpu.vector_store %arg7[%c0_19, %c0_20, %c0_21], %48 {strides = array<i32>} : memref<1x144x128xf32, #tpu.memory_space<vmem>>, vector<1x144x128xf32>,
    %c0_22 = arith.constant 0 : index
    %c0_23 = arith.constant 0 : index
    %c0_24 = arith.constant 0 : index
    %49 = vector.load %arg8[%c0_22, %c0_23, %c0_24] : memref<1x144x128xf32, #tpu.memory_space<vmem>>, vector<1x144x128xf32>
    %50 = vector.shape_cast %49 : vector<1x144x128xf32> to vector<144x128xf32>
    %51 = vector.shape_cast %43 : vector<144x128xf32> to vector<1x144x128xf32>
    tpu.vector_store %arg8[%c0_22, %c0_23, %c0_24], %51 {strides = array<i32>} : memref<1x144x128xf32, #tpu.memory_space<vmem>>, vector<1x144x128xf32>,
    return
  }
  func.func @transform_0(%arg0: i32, %arg1: i32) -> (i32, i32, i32) {
    %c0_i32 = arith.constant 0 : i32
    %c0_i32_0 = arith.constant 0 : i32
    return %arg0, %arg1, %c0_i32 : i32, i32, i32
  }
  func.func @transform_1(%arg0: i32, %arg1: i32) -> (i32, i32) {
    %c0_i32 = arith.constant 0 : i32
    %c0_i32_0 = arith.constant 0 : i32
    %c0_i32_1 = arith.constant 0 : i32
    return %c0_i32, %c0_i32_0 : i32, i32
  }
  func.func @transform_2(%arg0: i32, %arg1: i32) -> (i32, i32) {
    %c0_i32 = arith.constant 0 : i32
    %c0_i32_0 = arith.constant 0 : i32
    %c0_i32_1 = arith.constant 0 : i32
    return %c0_i32, %c0_i32_0 : i32, i32
  }
  func.func @transform_3(%arg0: i32, %arg1: i32) -> (i32, i32, i32) {
    %c0_i32 = arith.constant 0 : i32
    %c0_i32_0 = arith.constant 0 : i32
    %c0_i32_1 = arith.constant 0 : i32
    return %c0_i32, %arg1, %c0_i32_0 : i32, i32, i32
  }
  func.func @transform_4(%arg0: i32, %arg1: i32) -> (i32, i32, i32) {
    %c0_i32 = arith.constant 0 : i32
    %c0_i32_0 = arith.constant 0 : i32
    return %arg0, %arg1, %c0_i32 : i32, i32, i32
  }
  func.func @transform_5(%arg0: i32, %arg1: i32) -> (i32, i32, i32) {
    %c0_i32 = arith.constant 0 : i32
    %c0_i32_0 = arith.constant 0 : i32
    return %arg0, %arg1, %c0_i32 : i32, i32, i32
  }
  func.func @transform_6(%arg0: i32, %arg1: i32) -> (i32, i32, i32) {
    %c0_i32 = arith.constant 0 : i32
    %c0_i32_0 = arith.constant 0 : i32
    return %arg0, %arg1, %c0_i32 : i32, i32, i32
  }
}

</mosaic_0001>

<llo_original>
// kernel: tpu_custom_call.1
$region0: #{tpu_custom_call.1}
  #allocation0 [shape = 'u32[]', space=smem, size = 0x4, offset = 0x4, fixed_abs, tag = 'smem constant byte address 0x4 - core index']
  #allocation1 [shape = 'u32[144,128]{1,0:T(1,128)}', space=vmem, size = 0x12000, scoped, tag = 'internal scratch']
  %s0 = inlined_call_operand.vmem [shape: bf16[2,144,384], index: 0, kind: input, shape index: {}]
  %s1 = inlined_call_operand.hbm [shape: bf16[384,512], index: 1, kind: input, shape index: {}]
  %s2 = inlined_call_operand.vmem [shape: f32[1,512], index: 2, kind: input, shape index: {}]
  %s3 = inlined_call_operand.hbm [shape: f32[3,144,128], index: 3, kind: input, shape index: {}]
  %s4 = inlined_call_operand.hbm [shape: f32[2,144,128], index: 4, kind: input, shape index: {}, may-alias: {4,6}]
  %s5 = inlined_call_operand.hbm [shape: f32[2,144,128], index: 5, kind: output, shape index: {0}]
  %s6 = inlined_call_operand.hbm [shape: f32[2,144,128], index: 6, kind: output, shape index: {1}, may-alias: {4,6}]
  %7 = xla_tuple %s5, %s6
  %s8 = sld [smem:[#allocation0]]
  $region73: #{tpu_custom_call.1} parent=0
    _
  %s10 = ssub.s32 1, %s8
  %s11 = scalar_select 0, %s10, %s8
  $region1: #{tpu_custom_call.1} parent=0
    #allocation2 [shape = 'u8[393216]{0}', space=vmem, size = 0x60000, scoped, tag = 'input window, operand 1, single buffered']
    #allocation3 [shape = 's32[2]{0}', space=sflag, size = 0x8, scoped, tag = 'scoped memory for tpu_custom_call.1']
    #allocation4 [shape = 's32[2]{0}', space=sflag, size = 0x8, scoped, tag = 'scoped memory for tpu_custom_call.1']
    #allocation5 [shape = 'u8[221184]{0}', space=vmem, size = 0x36000, scoped, tag = 'input window, operand 3, single buffered']
    #allocation6 [shape = 's32[1]{0}', space=sflag, size = 0x4, scoped, tag = 'scoped memory for tpu_custom_call.1']
    #allocation7 [shape = 'u8[147456]{0}', space=vmem, size = 0x24000, scoped, tag = 'input window, operand 4']
    #allocation8 [shape = 'u8[147456]{0}', space=vmem, size = 0x24000, scoped, tag = 'output window, operand 0']
    #allocation9 [shape = 'u8[147456]{0}', space=vmem, size = 0x24000, scoped, tag = 'output window, operand 1']
    #allocation10 [shape = 's32[2]{0}', space=sflag, size = 0x8, scoped, tag = 'scoped memory for tpu_custom_call.1']
    %12 = vsyncpa [#allocation3], 0
    %13 = vsyncpa [#allocation6], 0
    %14 = vsyncpa [#allocation4], 0
    %s15 = scalar_lea.sflag [#allocation4], 1
    %16 = vsyncpa %s15, 0
    %17 = vsyncpa [#allocation10], 0
    %s18 = scalar_lea.sflag [#allocation10], 1
    %19 = vsyncpa %s18, 0
    loop: start=0, step=1, limit=4
    $region2: #{tpu_custom_call.1} parent=1 // loop_pre_header
      _
    $region3: #{tpu_custom_call.1} parent=1 // loop_header
      %s21 = sphi 0, %s25
      %p22 = scmp.ge.s32.totalorder %s21, 4
      %s28 = sphi 0, %s40
      %s29 = sphi 0, %s36
      %s30 = sphi 0, %s28
      %s31 = sphi 0, %s29
      %s32 = sphi 0, %s30
      %s33 = sphi 0, %s31
      %s45 = sphi 0, %s47
      %s48 = sphi 0, %s45
      %s49 = sphi 0, %s48
      %s65 = sphi 0, %s49
      %s69 = sphi 0, %s69
      %s71 = sphi 0, %s69
      %s72 = sphi 0, %s71
      %s86 = sphi 0, %s72
      %s90 = sphi 0, %s90
      %s92 = sphi 0, %s90
      %s93 = sphi 0, %s92
      %s107 = sphi 0, %s93
      %s113 = sphi 0, %s115
      %s116 = sphi 0, %s113
      %s117 = sphi 0, %s116
      %s133 = sphi 0, %s117
      %s141 = sphi 0, %s143
      %s144 = sphi 0, %s141
      %s145 = sphi 0, %s144
      %s161 = sphi 0, %s145
      %s169 = sphi 0, %s171
      %s172 = sphi 0, %s169
      %s173 = sphi 0, %s172
      %s189 = sphi 0, %s173
      %s197 = sphi 0, %s199
      %s200 = sphi 0, %s197
      %s201 = sphi 0, %s200
      %s217 = sphi 0, %s201
    $region4: #{tpu_custom_call.1} parent=1 // loop_header_branch
      %24 = sbr.rel (%p22) target = $region8
    $region5: #{tpu_custom_call.1} parent=1 // loop_body
      %s26 = ssub.s32 %s21, 1
      %s27 = ssub.s32 %s21, 2
      %s34 = sadd.s32 1, %s29
      %p35 = scmp.ge.s32.totalorder %s34, 1
      %s36 = scalar_select %p35, 0, %s34
      %s37 = sadd.s32 1, %s28
      %s38 = scalar_select %p35, %s37, %s28
      %p39 = scmp.ge.s32.totalorder %s38, 2
      %s40 = scalar_select %p39, 0, %s38
      %s41 = ssub.s32 %s28, %s40
      %s42 = ssub.s32 %s29, %s36
      %s43 = sor.u32 %s41, %s42
      %p44 = scmp.eq.s32.totalorder %s43, 0
      %s46 = sadd.s32 %s45, 1
      %s47 = scalar_select %p44, %s45, %s46
      %p50 = pneg %p44
      %p51 = scmp.eq.s32.totalorder %s21, 1
      %p52 = por %p50, %p51
      %p53 = scmp.ne.s32.totalorder %s45, %s48
      %p54 = scmp.eq.s32.totalorder %s21, 0
      %p55 = por %p53, %p54
      %p56 = scmp.ne.s32.totalorder %s45, %s48
      %p57 = scmp.eq.s32.totalorder %s26, 1
      %p58 = por %p56, %p57
      %p59 = scmp.ne.s32.totalorder %s48, %s49
      %p60 = scmp.eq.s32.totalorder %s26, 0
      %p61 = por %p59, %p60
      %p62 = scmp.ne.s32.totalorder %s48, %s49
      %p63 = scmp.eq.s32.totalorder %s27, 1
      %p64 = por %p62, %p63
      %p66 = scmp.ne.s32.totalorder %s49, %s65
      %p67 = scmp.eq.s32.totalorder %s27, 0
      %p68 = por %p66, %p67
      %s70 = sadd.s32 %s69, 1
      %p73 = scmp.eq.s32.totalorder %s21, 1
      %p74 = scmp.ne.s32.totalorder %s69, %s71
      %p75 = scmp.eq.s32.totalorder %s21, 0
      %p76 = por %p74, %p75
      %p77 = scmp.ne.s32.totalorder %s69, %s71
      %p78 = scmp.eq.s32.totalorder %s26, 1
      %p79 = por %p77, %p78
      %p80 = scmp.ne.s32.totalorder %s71, %s72
      %p81 = scmp.eq.s32.totalorder %s26, 0
      %p82 = por %p80, %p81
      %p83 = scmp.ne.s32.totalorder %s71, %s72
      %p84 = scmp.eq.s32.totalorder %s27, 1
      %p85 = por %p83, %p84
      %p87 = scmp.ne.s32.totalorder %s72, %s86
      %p88 = scmp.eq.s32.totalorder %s27, 0
      %p89 = por %p87, %p88
      %s91 = sadd.s32 %s90, 1
      %p94 = scmp.eq.s32.totalorder %s21, 1
      %p95 = scmp.ne.s32.totalorder %s90, %s92
      %p96 = scmp.eq.s32.totalorder %s21, 0
      %p97 = por %p95, %p96
      %p98 = scmp.ne.s32.totalorder %s90, %s92
      %p99 = scmp.eq.s32.totalorder %s26, 1
      %p100 = por %p98, %p99
      %p101 = scmp.ne.s32.totalorder %s92, %s93
      %p102 = scmp.eq.s32.totalorder %s26, 0
      %p103 = por %p101, %p102
      %p104 = scmp.ne.s32.totalorder %s92, %s93
      %p105 = scmp.eq.s32.totalorder %s27, 1
      %p106 = por %p104, %p105
      %p108 = scmp.ne.s32.totalorder %s93, %s107
      %p109 = scmp.eq.s32.totalorder %s27, 0
      %p110 = por %p108, %p109
      %s111 = ssub.s32 %s29, %s36
      %p112 = scmp.eq.s32.totalorder %s111, 0
      %s114 = sadd.s32 %s113, 1
      %s115 = scalar_select %p112, %s113, %s114
      %p118 = pneg %p112
      %p119 = scmp.eq.s32.totalorder %s21, 1
      %p120 = por %p118, %p119
      %p121 = scmp.ne.s32.totalorder %s113, %s116
      %p122 = scmp.eq.s32.totalorder %s21, 0
      %p123 = por %p121, %p122
      %p124 = scmp.ne.s32.totalorder %s113, %s116
      %p125 = scmp.eq.s32.totalorder %s26, 1
      %p126 = por %p124, %p125
      %p127 = scmp.ne.s32.totalorder %s116, %s117
      %p128 = scmp.eq.s32.totalorder %s26, 0
      %p129 = por %p127, %p128
      %p130 = scmp.ne.s32.totalorder %s116, %s117
      %p131 = scmp.eq.s32.totalorder %s27, 1
      %p132 = por %p130, %p131
      %p134 = scmp.ne.s32.totalorder %s117, %s133
      %p135 = scmp.eq.s32.totalorder %s27, 0
      %p136 = por %p134, %p135
      %s137 = ssub.s32 %s28, %s40
      %s138 = ssub.s32 %s29, %s36
      %s139 = sor.u32 %s137, %s138
      %p140 = scmp.eq.s32.totalorder %s139, 0
      %s142 = sadd.s32 %s141, 1
      %s143 = scalar_select %p140, %s141, %s142
      %p146 = pneg %p140
      %p147 = scmp.eq.s32.totalorder %s21, 1
      %p148 = por %p146, %p147
      %p149 = scmp.ne.s32.totalorder %s141, %s144
      %p150 = scmp.eq.s32.totalorder %s21, 0
      %p151 = por %p149, %p150
      %p152 = scmp.ne.s32.totalorder %s141, %s144
      %p153 = scmp.eq.s32.totalorder %s26, 1
      %p154 = por %p152, %p153
      %p155 = scmp.ne.s32.totalorder %s144, %s145
      %p156 = scmp.eq.s32.totalorder %s26, 0
      %p157 = por %p155, %p156
      %p158 = scmp.ne.s32.totalorder %s144, %s145
      %p159 = scmp.eq.s32.totalorder %s27, 1
      %p160 = por %p158, %p159
      %p162 = scmp.ne.s32.totalorder %s145, %s161
      %p163 = scmp.eq.s32.totalorder %s27, 0
      %p164 = por %p162, %p163
      %s165 = ssub.s32 %s28, %s40
      %s166 = ssub.s32 %s29, %s36
      %s167 = sor.u32 %s165, %s166
      %p168 = scmp.eq.s32.totalorder %s167, 0
      %s170 = sadd.s32 %s169, 1
      %s171 = scalar_select %p168, %s169, %s170
      %p174 = pneg %p168
      %p175 = scmp.eq.s32.totalorder %s21, 1
      %p176 = por %p174, %p175
      %p177 = scmp.ne.s32.totalorder %s169, %s172
      %p178 = scmp.eq.s32.totalorder %s21, 0
      %p179 = por %p177, %p178
      %p180 = scmp.ne.s32.totalorder %s169, %s172
      %p181 = scmp.eq.s32.totalorder %s26, 1
      %p182 = por %p180, %p181
      %p183 = scmp.ne.s32.totalorder %s172, %s173
      %p184 = scmp.eq.s32.totalorder %s26, 0
      %p185 = por %p183, %p184
      %p186 = scmp.ne.s32.totalorder %s172, %s173
      %p187 = scmp.eq.s32.totalorder %s27, 1
      %p188 = por %p186, %p187
      %p190 = scmp.ne.s32.totalorder %s173, %s189
      %p191 = scmp.eq.s32.totalorder %s27, 0
      %p192 = por %p190, %p191
      %s193 = ssub.s32 %s28, %s40
      %s194 = ssub.s32 %s29, %s36
      %s195 = sor.u32 %s193, %s194
      %p196 = scmp.eq.s32.totalorder %s195, 0
      %s198 = sadd.s32 %s197, 1
      %s199 = scalar_select %p196, %s197, %s198
      %p202 = pneg %p196
      %p203 = scmp.eq.s32.totalorder %s21, 1
      %p204 = por %p202, %p203
      %p205 = scmp.ne.s32.totalorder %s197, %s200
      %p206 = scmp.eq.s32.totalorder %s21, 0
      %p207 = por %p205, %p206
      %p208 = scmp.ne.s32.totalorder %s197, %s200
      %p209 = scmp.eq.s32.totalorder %s26, 1
      %p210 = por %p208, %p209
      %p211 = scmp.ne.s32.totalorder %s200, %s201
      %p212 = scmp.eq.s32.totalorder %s26, 0
      %p213 = por %p211, %p212
      %p214 = scmp.ne.s32.totalorder %s200, %s201
      %p215 = scmp.eq.s32.totalorder %s27, 1
      %p216 = por %p214, %p215
      %p218 = scmp.ne.s32.totalorder %s201, %s217
      %p219 = scmp.eq.s32.totalorder %s27, 0
      %p220 = por %p218, %p219
      %p221 = scmp.le.s32.totalorder 1, %s21
      %p222 = scmp.lt.s32.totalorder %s21, 3
      %p223 = pnand %p221, %p222
      %p224 = pneg %p223
      // Predicated region
      $region9: #{tpu_custom_call.1} parent=5 // pred_check
        _
      $region10: #{tpu_custom_call.1} parent=5 // pred_check_branch
        %226 = sbr.rel (%p223) target = $region12
      $region11: #{tpu_custom_call.1} parent=5 // pred_region
        %s227 = ssub.s32 %s21, 1
        // Predicated region
        $region13: #{tpu_custom_call.1} parent=11 // pred_check
          %p228 = pneg %p82
        $region14: #{tpu_custom_call.1} parent=11 // pred_check_branch
          %230 = sbr.rel (%p228) target = $region16
        $region15: #{tpu_custom_call.1} parent=11 // pred_region
          %s232 = ssub.s32 12288, 12288
          %233 = vsyncadd [#allocation3], %s232
          %s234 = sshll.u32 [#allocation2], 4
          %s235 = int_to_ptr.vmem [resolvable:$true] %s234
          %240 = dma.hbm_to_vmem [thread:$0]  %s1, 12288, %s235, [#allocation3], 256, 256, 16
        $region16: #{tpu_custom_call.1} parent=11 // pred_fallthru
          _
        // Predicated region
        $region17: #{tpu_custom_call.1} parent=11 // pred_check
          %p241 = pneg %p103
        $region18: #{tpu_custom_call.1} parent=11 // pred_check_branch
          %243 = sbr.rel (%p241) target = $region20
        $region19: #{tpu_custom_call.1} parent=11 // pred_region
          _
        $region20: #{tpu_custom_call.1} parent=11 // pred_fallthru
          _
        // Predicated region
        $region21: #{tpu_custom_call.1} parent=11 // pred_check
          %p244 = pneg %p129
        $region22: #{tpu_custom_call.1} parent=11 // pred_check_branch
          %246 = sbr.rel (%p244) target = $region24
        $region23: #{tpu_custom_call.1} parent=11 // pred_region
          %s247 = smul.u32 18, %s31
          %s249 = ssub.s32 6912, 6912
          %250 = vsyncadd [#allocation6], %s249
          %s251 = smul.addr %s247, 128
          %s252 = scalar_lea.hbm %s3, %s251
          %s253 = sshll.u32 [#allocation5], 4
          %s254 = int_to_ptr.vmem [resolvable:$true] %s253
          %259 = dma.hbm_to_vmem [thread:$0]  %s252, 6912, %s254, [#allocation6], 128, 128, 8
        $region24: #{tpu_custom_call.1} parent=11 // pred_fallthru
          _
      $region12: #{tpu_custom_call.1} parent=5 // pred_fallthru
        _
      %p260 = scmp.lt.s32.totalorder %s21, 2
      // Predicated region
      $region25: #{tpu_custom_call.1} parent=5 // pred_check
        %p261 = pneg %p260
      $region26: #{tpu_custom_call.1} parent=5 // pred_check_branch
        %263 = sbr.rel (%p261) target = $region28
      $region27: #{tpu_custom_call.1} parent=5 // pred_region
        // Predicated region
        $region29: #{tpu_custom_call.1} parent=27 // pred_check
          %p264 = pneg %p55
        $region30: #{tpu_custom_call.1} parent=27 // pred_check_branch
          %266 = sbr.rel (%p264) target = $region32
        $region31: #{tpu_custom_call.1} parent=27 // pred_region
          %s267 = smul.u32 18, %s29
          %p268 = scmp.lt.s32.totalorder %s28, 1
          %s269 = scalar_select %p268, %s28, 1
          %p270 = scmp.lt.s32.totalorder %s267, 17
          %s271 = scalar_select %p270, %s267, 17
          %s272 = smul.addr %s271, 3
          %s273 = smul.addr %s269, 54
          %s274 = sadd.s32 %s272, %s273
          %s275 = smul.addr %s274, 4
          %s276 = scalar_lea.vmem %s0, %s275
          %s277 = smul.u32 18, %s29
        $region32: #{tpu_custom_call.1} parent=27 // pred_fallthru
          _
        // Predicated region
        $region33: #{tpu_custom_call.1} parent=27 // pred_check
          %p278 = pneg %p151
        $region34: #{tpu_custom_call.1} parent=27 // pred_check_branch
          %280 = sbr.rel (%p278) target = $region36
        $region35: #{tpu_custom_call.1} parent=27 // pred_region
          %s281 = sand.u32 %s21, 1
          %s282 = scalar_lea.sflag [#allocation3], %s281
          %s283 = sand.u32 %s141, 1
          %s284 = smul.addr %s283, 144
          %s285 = scalar_lea.vmem [#allocation7], %s284
          %s286 = smul.u32 18, %s29
          %s288 = ssub.s32 2304, 2304
          %289 = vsyncadd %s282, %s288
          %s290 = smul.addr %s28, 18
          %s291 = sadd.s32 %s286, %s290
          %s292 = smul.addr %s291, 128
          %s293 = scalar_lea.hbm %s4, %s292
          %s294 = sshll.u32 %s285, 4
          %s295 = int_to_ptr.vmem [resolvable:$true] %s294
          %300 = dma.hbm_to_vmem [thread:$0]  %s293, 2304, %s295, %s282, 128, 128, 8
        $region36: #{tpu_custom_call.1} parent=27 // pred_fallthru
          _
      $region28: #{tpu_custom_call.1} parent=5 // pred_fallthru
        _
      %p301 = scmp.le.s32.totalorder 1, %s21
      %p302 = scmp.lt.s32.totalorder %s21, 3
      %p303 = pnand %p301, %p302
      %p304 = pneg %p303
      // Predicated region
      $region37: #{tpu_custom_call.1} parent=5 // pred_check
        _
      $region38: #{tpu_custom_call.1} parent=5 // pred_check_branch
        %306 = sbr.rel (%p303) target = $region40
      $region39: #{tpu_custom_call.1} parent=5 // pred_region
        %s307 = ssub.s32 %s21, 1
        // Predicated region
        $region41: #{tpu_custom_call.1} parent=39 // pred_check
          %p308 = pneg %p82
        $region42: #{tpu_custom_call.1} parent=39 // pred_check_branch
          %310 = sbr.rel (%p308) target = $region44
        $region43: #{tpu_custom_call.1} parent=39 // pred_region
          %311 = dma.done [#allocation3], 12288
        $region44: #{tpu_custom_call.1} parent=39 // pred_fallthru
          _
        // Predicated region
        $region45: #{tpu_custom_call.1} parent=39 // pred_check
          %p312 = pneg %p129
        $region46: #{tpu_custom_call.1} parent=39 // pred_check_branch
          %314 = sbr.rel (%p312) target = $region48
        $region47: #{tpu_custom_call.1} parent=39 // pred_region
          %315 = dma.done [#allocation6], 6912
        $region48: #{tpu_custom_call.1} parent=39 // pred_fallthru
          _
        %s316 = sand.u32 %s26, 1
        %s317 = scalar_lea.sflag [#allocation3], %s316
        %s318 = sand.u32 %s144, 1
        %s319 = smul.addr %s318, 144
        %s320 = scalar_lea.vmem [#allocation7], %s319
        // Predicated region
        $region49: #{tpu_custom_call.1} parent=39 // pred_check
          %p321 = pneg %p157
        $region50: #{tpu_custom_call.1} parent=39 // pred_check_branch
          %323 = sbr.rel (%p321) target = $region52
        $region51: #{tpu_custom_call.1} parent=39 // pred_region
          %324 = dma.done %s317, 2304
        $region52: #{tpu_custom_call.1} parent=39 // pred_fallthru
          _
        %s325 = smul.u32 18, %s31
        %p326 = scmp.lt.s32.totalorder %s30, 1
        %s327 = scalar_select %p326, %s30, 1
        %p328 = scmp.lt.s32.totalorder %s325, 17
        %s329 = scalar_select %p328, %s325, 17
        %s330 = smul.addr %s329, 3
        %s331 = smul.addr %s327, 54
        %s332 = sadd.s32 %s330, %s331
        %s333 = smul.addr %s332, 4
        %s334 = scalar_lea.vmem %s0, %s333
        %p335 = pneg %p61
        %p336 = pneg %p58
        %p337 = pneg %p82
        %p338 = pneg %p79
        %p339 = pneg %p103
        %p340 = pneg %p100
        %p341 = pneg %p129
        %p342 = pneg %p126
        %s343 = sand.u32 %s26, 1
        %s344 = scalar_lea.sflag [#allocation3], %s343
        %s345 = sand.u32 %s144, 1
        %s346 = smul.addr %s345, 144
        %s347 = scalar_lea.vmem [#allocation7], %s346
        %p348 = pneg %p157
        %p349 = pneg %p154
        %p350 = pneg %p185
        %p351 = pneg %p182
        %s352 = sand.u32 %s172, 1
        %s353 = scalar_lea.sflag [#allocation4], %s352
        %s354 = sand.u32 %s172, 1
        %s355 = smul.addr %s354, 144
        %s356 = scalar_lea.vmem [#allocation8], %s355
        %p357 = pneg %p213
        %p358 = pneg %p210
        %s359 = sand.u32 %s200, 1
        %s360 = scalar_lea.sflag [#allocation10], %s359
        %s361 = sand.u32 %s200, 1
        %s362 = smul.addr %s361, 144
        %s363 = scalar_lea.vmem [#allocation9], %s362
        %s364 = smul.u32 18, %s31
        %p365 = scmp.lt.s32.totalorder %s30, 1
        %s366 = scalar_select %p365, %s30, 1
        %p367 = scmp.lt.s32.totalorder %s364, 17
        %s368 = scalar_select %p367, %s364, 17
        %s369 = smul.addr %s368, 3
        %s370 = smul.addr %s366, 54
        %s371 = sadd.s32 %s369, %s370
        %s372 = smul.addr %s371, 4
        %s373 = scalar_lea.vmem %s0, %s372
        %s374 = smul.u32 18, %s31
        %s375 = smul.u32 18, %s31
        %s376 = smul.u32 18, %s31
        %s377 = smul.u32 18, %s31
        %s378 = smul.u32 18, %s31
        %v380 = vld [vmem:[%s373] sm:$0xff]
        %v381 = vld [vmem:[%s373 + $0x8] sm:$0xf]
        %v382 = vld [vmem:[%s373 + $0xc] sm:$0xff]
        %v383 = vld [vmem:[%s373 + $0x14] sm:$0xf]
        %v384 = vld [vmem:[%s373 + $0x18] sm:$0xff]
        %v385 = vld [vmem:[%s373 + $0x20] sm:$0xf]
        %v386 = vld [vmem:[%s373 + $0x24] sm:$0xff]
        %v387 = vld [vmem:[%s373 + $0x2c] sm:$0xf]
        %v388 = vld [vmem:[%s373 + $0x30] sm:$0xff]
        %v389 = vld [vmem:[%s373 + $0x38] sm:$0xf]
        %v390 = vld [vmem:[%s373 + $0x3c] sm:$0xff]
        %v391 = vld [vmem:[%s373 + $0x44] sm:$0xf]
        %v392 = vld [vmem:[%s373 + $0x48] sm:$0xff]
        %v393 = vld [vmem:[%s373 + $0x50] sm:$0xf]
        %v394 = vld [vmem:[%s373 + $0x54] sm:$0xff]
        %v395 = vld [vmem:[%s373 + $0x5c] sm:$0xf]
        %v396 = vld [vmem:[%s373 + $0x60] sm:$0xff]
        %v397 = vld [vmem:[%s373 + $0x68] sm:$0xf]
        %v398 = vld [vmem:[%s373 + $0x6c] sm:$0xff]
        %v399 = vld [vmem:[%s373 + $0x74] sm:$0xf]
        %v400 = vld [vmem:[%s373 + $0x78] sm:$0xff]
        %v401 = vld [vmem:[%s373 + $0x80] sm:$0xf]
        %v402 = vld [vmem:[%s373 + $0x84] sm:$0xff]
        %v403 = vld [vmem:[%s373 + $0x8c] sm:$0xf]
        %v404 = vld [vmem:[%s373 + $0x90] sm:$0xff]
        %v405 = vld [vmem:[%s373 + $0x98] sm:$0xf]
        %v406 = vld [vmem:[%s373 + $0x9c] sm:$0xff]
        %v407 = vld [vmem:[%s373 + $0xa4] sm:$0xf]
        %v408 = vld [vmem:[%s373 + $0xa8] sm:$0xff]
        %v409 = vld [vmem:[%s373 + $0xb0] sm:$0xf]
        %v410 = vld [vmem:[%s373 + $0xb4] sm:$0xff]
        %v411 = vld [vmem:[%s373 + $0xbc] sm:$0xf]
        %v412 = vld [vmem:[%s373 + $0xc0] sm:$0xff]
        %v413 = vld [vmem:[%s373 + $0xc8] sm:$0xf]
        %v414 = vld [vmem:[%s373 + $0xcc] sm:$0xff]
        %v415 = vld [vmem:[%s373 + $0xd4] sm:$0xf]
        %v416 = vld [vmem:[#allocation2] sm:$0xff]
        %v417 = vld [vmem:[#allocation2 + $0x8] sm:$0xff]
        %v418 = vld [vmem:[#allocation2 + $0x10] sm:$0xff]
        %v419 = vld [vmem:[#allocation2 + $0x18] sm:$0xff]
        %v420 = vld [vmem:[#allocation2 + $0x20] sm:$0xff]
        %v421 = vld [vmem:[#allocation2 + $0x28] sm:$0xff]
        %v422 = vld [vmem:[#allocation2 + $0x30] sm:$0xff]
        %v423 = vld [vmem:[#allocation2 + $0x38] sm:$0xff]
        %v424 = vld [vmem:[#allocation2 + $0x40] sm:$0xff]
        %v425 = vld [vmem:[#allocation2 + $0x48] sm:$0xff]
        %v426 = vld [vmem:[#allocation2 + $0x50] sm:$0xff]
        %v427 = vld [vmem:[#allocation2 + $0x58] sm:$0xff]
        %v428 = vld [vmem:[#allocation2 + $0x60] sm:$0xff]
        %v429 = vld [vmem:[#allocation2 + $0x68] sm:$0xff]
        %v430 = vld [vmem:[#allocation2 + $0x70] sm:$0xff]
        %v431 = vld [vmem:[#allocation2 + $0x78] sm:$0xff]
        %v432 = vld [vmem:[#allocation2 + $0x80] sm:$0xff]
        %v433 = vld [vmem:[#allocation2 + $0x88] sm:$0xff]
        %v434 = vld [vmem:[#allocation2 + $0x90] sm:$0xff]
        %v435 = vld [vmem:[#allocation2 + $0x98] sm:$0xff]
        %v436 = vld [vmem:[#allocation2 + $0xa0] sm:$0xff]
        %v437 = vld [vmem:[#allocation2 + $0xa8] sm:$0xff]
        %v438 = vld [vmem:[#allocation2 + $0xb0] sm:$0xff]
        %v439 = vld [vmem:[#allocation2 + $0xb8] sm:$0xff]
        %v440 = vld [vmem:[#allocation2 + $0xc0] sm:$0xff]
        %v441 = vld [vmem:[#allocation2 + $0xc8] sm:$0xff]
        %v442 = vld [vmem:[#allocation2 + $0xd0] sm:$0xff]
        %v443 = vld [vmem:[#allocation2 + $0xd8] sm:$0xff]
        %v444 = vld [vmem:[#allocation2 + $0xe0] sm:$0xff]
        %v445 = vld [vmem:[#allocation2 + $0xe8] sm:$0xff]
        %v446 = vld [vmem:[#allocation2 + $0xf0] sm:$0xff]
        %v447 = vld [vmem:[#allocation2 + $0xf8] sm:$0xff]
        %v448 = vld [vmem:[#allocation2 + $0x100] sm:$0xff]
        %v449 = vld [vmem:[#allocation2 + $0x108] sm:$0xff]
        %v450 = vld [vmem:[#allocation2 + $0x110] sm:$0xff]
        %v451 = vld [vmem:[#allocation2 + $0x118] sm:$0xff]
        %v452 = vld [vmem:[#allocation2 + $0x120] sm:$0xff]
        %v453 = vld [vmem:[#allocation2 + $0x128] sm:$0xff]
        %v454 = vld [vmem:[#allocation2 + $0x130] sm:$0xff]
        %v455 = vld [vmem:[#allocation2 + $0x138] sm:$0xff]
        %v456 = vld [vmem:[#allocation2 + $0x140] sm:$0xff]
        %v457 = vld [vmem:[#allocation2 + $0x148] sm:$0xff]
        %v458 = vld [vmem:[#allocation2 + $0x150] sm:$0xff]
        %v459 = vld [vmem:[#allocation2 + $0x158] sm:$0xff]
        %v460 = vld [vmem:[#allocation2 + $0x160] sm:$0xff]
        %v461 = vld [vmem:[#allocation2 + $0x168] sm:$0xff]
        %v462 = vld [vmem:[#allocation2 + $0x170] sm:$0xff]
        %v463 = vld [vmem:[#allocation2 + $0x178] sm:$0xff]
        %v464 = vld [vmem:[#allocation2 + $0x180] sm:$0xff]
        %v465 = vld [vmem:[#allocation2 + $0x188] sm:$0xff]
        %v466 = vld [vmem:[#allocation2 + $0x190] sm:$0xff]
        %v467 = vld [vmem:[#allocation2 + $0x198] sm:$0xff]
        %v468 = vld [vmem:[#allocation2 + $0x1a0] sm:$0xff]
        %v469 = vld [vmem:[#allocation2 + $0x1a8] sm:$0xff]
        %v470 = vld [vmem:[#allocation2 + $0x1b0] sm:$0xff]
        %v471 = vld [vmem:[#allocation2 + $0x1b8] sm:$0xff]
        %v472 = vld [vmem:[#allocation2 + $0x1c0] sm:$0xff]
        %v473 = vld [vmem:[#allocation2 + $0x1c8] sm:$0xff]
        %v474 = vld [vmem:[#allocation2 + $0x1d0] sm:$0xff]
        %v475 = vld [vmem:[#allocation2 + $0x1d8] sm:$0xff]
        %v476 = vld [vmem:[#allocation2 + $0x1e0] sm:$0xff]
        %v477 = vld [vmem:[#allocation2 + $0x1e8] sm:$0xff]
        %v478 = vld [vmem:[#allocation2 + $0x1f0] sm:$0xff]
        %v479 = vld [vmem:[#allocation2 + $0x1f8] sm:$0xff]
        %v480 = vld [vmem:[#allocation2 + $0x200] sm:$0xff]
        %v481 = vld [vmem:[#allocation2 + $0x208] sm:$0xff]
        %v482 = vld [vmem:[#allocation2 + $0x210] sm:$0xff]
        %v483 = vld [vmem:[#allocation2 + $0x218] sm:$0xff]
        %v484 = vld [vmem:[#allocation2 + $0x220] sm:$0xff]
        %v485 = vld [vmem:[#allocation2 + $0x228] sm:$0xff]
        %v486 = vld [vmem:[#allocation2 + $0x230] sm:$0xff]
        %v487 = vld [vmem:[#allocation2 + $0x238] sm:$0xff]
        %v488 = vld [vmem:[#allocation2 + $0x240] sm:$0xff]
        %v489 = vld [vmem:[#allocation2 + $0x248] sm:$0xff]
        %v490 = vld [vmem:[#allocation2 + $0x250] sm:$0xff]
        %v491 = vld [vmem:[#allocation2 + $0x258] sm:$0xff]
        %v492 = vld [vmem:[#allocation2 + $0x260] sm:$0xff]
        %v493 = vld [vmem:[#allocation2 + $0x268] sm:$0xff]
        %v494 = vld [vmem:[#allocation2 + $0x270] sm:$0xff]
        %v495 = vld [vmem:[#allocation2 + $0x278] sm:$0xff]
        %v496 = vld [vmem:[#allocation2 + $0x280] sm:$0xff]
        %v497 = vld [vmem:[#allocation2 + $0x288] sm:$0xff]
        %v498 = vld [vmem:[#allocation2 + $0x290] sm:$0xff]
        %v499 = vld [vmem:[#allocation2 + $0x298] sm:$0xff]
        %v500 = vld [vmem:[#allocation2 + $0x2a0] sm:$0xff]
        %v501 = vld [vmem:[#allocation2 + $0x2a8] sm:$0xff]
        %v502 = vld [vmem:[#allocation2 + $0x2b0] sm:$0xff]
        %v503 = vld [vmem:[#allocation2 + $0x2b8] sm:$0xff]
        %v504 = vld [vmem:[#allocation2 + $0x2c0] sm:$0xff]
        %v505 = vld [vmem:[#allocation2 + $0x2c8] sm:$0xff]
        %v506 = vld [vmem:[#allocation2 + $0x2d0] sm:$0xff]
        %v507 = vld [vmem:[#allocation2 + $0x2d8] sm:$0xff]
        %v508 = vld [vmem:[#allocation2 + $0x2e0] sm:$0xff]
        %v509 = vld [vmem:[#allocation2 + $0x2e8] sm:$0xff]
        %v510 = vld [vmem:[#allocation2 + $0x2f0] sm:$0xff]
        %v511 = vld [vmem:[#allocation2 + $0x2f8] sm:$0xff]
        %v512 = vld [vmem:[%s2] sm:$0xf]
        %v514 = vlaneseq
        %v515 = vshrl.u32 %v514, 7
        %v516 = vsub.s32 0, %v515
        %v517 = vrot.slane %v512, %v516
        %v518 = vlaneseq
        %v519 = vshrl.u32 %v518, 7
        %v520 = vsub.s32 1, %v519
        %v521 = vrot.slane %v512, %v520
        %v522 = vlaneseq
        %v523 = vshrl.u32 %v522, 7
        %v524 = vsub.s32 2, %v523
        %v525 = vrot.slane %v512, %v524
        %v526 = vlaneseq
        %v527 = vshrl.u32 %v526, 7
        %v528 = vsub.s32 3, %v527
        %v529 = vrot.slane %v512, %v528
        %v570 = vunpack.c.l.b16 %v380
        %v571 = vunpack.c.h.b16 %v380
        %v572 = vunpack.c.l.b16 %v381
        %v573 = vunpack.c.l.b16 %v382
        %v574 = vunpack.c.h.b16 %v382
        %v575 = vunpack.c.l.b16 %v383
        %v576 = vunpack.c.l.b16 %v384
        %v577 = vunpack.c.h.b16 %v384
        %v578 = vunpack.c.l.b16 %v385
        %v579 = vunpack.c.l.b16 %v386
        %v580 = vunpack.c.h.b16 %v386
        %v581 = vunpack.c.l.b16 %v387
        %v582 = vunpack.c.l.b16 %v388
        %v583 = vunpack.c.h.b16 %v388
        %v584 = vunpack.c.l.b16 %v389
        %v585 = vunpack.c.l.b16 %v390
        %v586 = vunpack.c.h.b16 %v390
        %v587 = vunpack.c.l.b16 %v391
        %v588 = vunpack.c.l.b16 %v392
        %v589 = vunpack.c.h.b16 %v392
        %v590 = vunpack.c.l.b16 %v393
        %v591 = vunpack.c.l.b16 %v394
        %v592 = vunpack.c.h.b16 %v394
        %v593 = vunpack.c.l.b16 %v395
        %v594 = vunpack.c.l.b16 %v396
        %v595 = vunpack.c.h.b16 %v396
        %v596 = vunpack.c.l.b16 %v397
        %v597 = vunpack.c.l.b16 %v398
        %v598 = vunpack.c.h.b16 %v398
        %v599 = vunpack.c.l.b16 %v399
        %v600 = vunpack.c.l.b16 %v400
        %v601 = vunpack.c.h.b16 %v400
        %v602 = vunpack.c.l.b16 %v401
        %v603 = vunpack.c.l.b16 %v402
        %v604 = vunpack.c.h.b16 %v402
        %v605 = vunpack.c.l.b16 %v403
        %v606 = vunpack.c.l.b16 %v404
        %v607 = vunpack.c.h.b16 %v404
        %v608 = vunpack.c.l.b16 %v405
        %v609 = vunpack.c.l.b16 %v406
        %v610 = vunpack.c.h.b16 %v406
        %v611 = vunpack.c.l.b16 %v407
        %v612 = vunpack.c.l.b16 %v408
        %v613 = vunpack.c.h.b16 %v408
        %v614 = vunpack.c.l.b16 %v409
        %v615 = vunpack.c.l.b16 %v410
        %v616 = vunpack.c.h.b16 %v410
        %v617 = vunpack.c.l.b16 %v411
        %v618 = vunpack.c.l.b16 %v412
        %v619 = vunpack.c.h.b16 %v412
        %v620 = vunpack.c.l.b16 %v413
        %v621 = vunpack.c.l.b16 %v414
        %v622 = vunpack.c.h.b16 %v414
        %v623 = vunpack.c.l.b16 %v415
        %v624 = vpack.c.b16 %v573, %v570
        %v625 = vpack.c.b16 %v574, %v571
        %v626 = vpack.c.b16 %v575, %v572
        %v627 = vpack.c.b16 %v579, %v576
        %v628 = vpack.c.b16 %v580, %v577
        %v629 = vpack.c.b16 %v581, %v578
        %v630 = vpack.c.b16 %v585, %v582
        %v631 = vpack.c.b16 %v586, %v583
        %v632 = vpack.c.b16 %v587, %v584
        %v633 = vpack.c.b16 %v591, %v588
        %v634 = vpack.c.b16 %v592, %v589
        %v635 = vpack.c.b16 %v593, %v590
        %v636 = vpack.c.b16 %v597, %v594
        %v637 = vpack.c.b16 %v598, %v595
        %v638 = vpack.c.b16 %v599, %v596
        %v639 = vpack.c.b16 %v603, %v600
        %v640 = vpack.c.b16 %v604, %v601
        %v641 = vpack.c.b16 %v605, %v602
        %v642 = vpack.c.b16 %v609, %v606
        %v643 = vpack.c.b16 %v610, %v607
        %v644 = vpack.c.b16 %v611, %v608
        %v645 = vpack.c.b16 %v615, %v612
        %v646 = vpack.c.b16 %v616, %v613
        %v647 = vpack.c.b16 %v617, %v614
        %v648 = vpack.c.b16 %v621, %v618
        %v649 = vpack.c.b16 %v622, %v619
        %v650 = vpack.c.b16 %v623, %v620
        %v774 = vunpack.c.l.b16 %v416
        %v775 = vunpack.c.h.b16 %v416
        %v776 = vunpack.c.l.b16 %v417
        %v777 = vunpack.c.h.b16 %v417
        %v778 = vunpack.c.l.b16 %v418
        %v779 = vunpack.c.h.b16 %v418
        %v780 = vunpack.c.l.b16 %v419
        %v781 = vunpack.c.h.b16 %v419
        %v782 = vunpack.c.l.b16 %v420
        %v783 = vunpack.c.h.b16 %v420
        %v784 = vunpack.c.l.b16 %v421
        %v785 = vunpack.c.h.b16 %v421
        %v786 = vunpack.c.l.b16 %v422
        %v787 = vunpack.c.h.b16 %v422
        %v788 = vunpack.c.l.b16 %v423
        %v789 = vunpack.c.h.b16 %v423
        %v790 = vunpack.c.l.b16 %v424
        %v791 = vunpack.c.h.b16 %v424
        %v792 = vunpack.c.l.b16 %v425
        %v793 = vunpack.c.h.b16 %v425
        %v794 = vunpack.c.l.b16 %v426
        %v795 = vunpack.c.h.b16 %v426
        %v796 = vunpack.c.l.b16 %v427
        %v797 = vunpack.c.h.b16 %v427
        %v798 = vunpack.c.l.b16 %v428
        %v799 = vunpack.c.h.b16 %v428
        %v800 = vunpack.c.l.b16 %v429
        %v801 = vunpack.c.h.b16 %v429
        %v802 = vunpack.c.l.b16 %v430
        %v803 = vunpack.c.h.b16 %v430
        %v804 = vunpack.c.l.b16 %v431
        %v805 = vunpack.c.h.b16 %v431
        %v806 = vunpack.c.l.b16 %v432
        %v807 = vunpack.c.h.b16 %v432
        %v808 = vunpack.c.l.b16 %v433
        %v809 = vunpack.c.h.b16 %v433
        %v810 = vunpack.c.l.b16 %v434
        %v811 = vunpack.c.h.b16 %v434
        %v812 = vunpack.c.l.b16 %v435
        %v813 = vunpack.c.h.b16 %v435
        %v814 = vunpack.c.l.b16 %v436
        %v815 = vunpack.c.h.b16 %v436
        %v816 = vunpack.c.l.b16 %v437
        %v817 = vunpack.c.h.b16 %v437
        %v818 = vunpack.c.l.b16 %v438
        %v819 = vunpack.c.h.b16 %v438
        %v820 = vunpack.c.l.b16 %v439
        %v821 = vunpack.c.h.b16 %v439
        %v822 = vunpack.c.l.b16 %v440
        %v823 = vunpack.c.h.b16 %v440
        %v824 = vunpack.c.l.b16 %v441
        %v825 = vunpack.c.h.b16 %v441
        %v826 = vunpack.c.l.b16 %v442
        %v827 = vunpack.c.h.b16 %v442
        %v828 = vunpack.c.l.b16 %v443
        %v829 = vunpack.c.h.b16 %v443
        %v830 = vunpack.c.l.b16 %v444
        %v831 = vunpack.c.h.b16 %v444
        %v832 = vunpack.c.l.b16 %v445
        %v833 = vunpack.c.h.b16 %v445
        %v834 = vunpack.c.l.b16 %v446
        %v835 = vunpack.c.h.b16 %v446
        %v836 = vunpack.c.l.b16 %v447
        %v837 = vunpack.c.h.b16 %v447
        %v838 = vunpack.c.l.b16 %v448
        %v839 = vunpack.c.h.b16 %v448
        %v840 = vunpack.c.l.b16 %v449
        %v841 = vunpack.c.h.b16 %v449
        %v842 = vunpack.c.l.b16 %v450
        %v843 = vunpack.c.h.b16 %v450
        %v844 = vunpack.c.l.b16 %v451
        %v845 = vunpack.c.h.b16 %v451
        %v846 = vunpack.c.l.b16 %v452
        %v847 = vunpack.c.h.b16 %v452
        %v848 = vunpack.c.l.b16 %v453
        %v849 = vunpack.c.h.b16 %v453
        %v850 = vunpack.c.l.b16 %v454
        %v851 = vunpack.c.h.b16 %v454
        %v852 = vunpack.c.l.b16 %v455
        %v853 = vunpack.c.h.b16 %v455
        %v854 = vunpack.c.l.b16 %v456
        %v855 = vunpack.c.h.b16 %v456
        %v856 = vunpack.c.l.b16 %v457
        %v857 = vunpack.c.h.b16 %v457
        %v858 = vunpack.c.l.b16 %v458
        %v859 = vunpack.c.h.b16 %v458
        %v860 = vunpack.c.l.b16 %v459
        %v861 = vunpack.c.h.b16 %v459
        %v862 = vunpack.c.l.b16 %v460
        %v863 = vunpack.c.h.b16 %v460
        %v864 = vunpack.c.l.b16 %v461
        %v865 = vunpack.c.h.b16 %v461
        %v866 = vunpack.c.l.b16 %v462
        %v867 = vunpack.c.h.b16 %v462
        %v868 = vunpack.c.l.b16 %v463
        %v869 = vunpack.c.h.b16 %v463
        %v870 = vunpack.c.l.b16 %v464
        %v871 = vunpack.c.h.b16 %v464
        %v872 = vunpack.c.l.b16 %v465
        %v873 = vunpack.c.h.b16 %v465
        %v874 = vunpack.c.l.b16 %v466
        %v875 = vunpack.c.h.b16 %v466
        %v876 = vunpack.c.l.b16 %v467
        %v877 = vunpack.c.h.b16 %v467
        %v878 = vunpack.c.l.b16 %v468
        %v879 = vunpack.c.h.b16 %v468
        %v880 = vunpack.c.l.b16 %v469
        %v881 = vunpack.c.h.b16 %v469
        %v882 = vunpack.c.l.b16 %v470
        %v883 = vunpack.c.h.b16 %v470
        %v884 = vunpack.c.l.b16 %v471
        %v885 = vunpack.c.h.b16 %v471
        %v886 = vunpack.c.l.b16 %v472
        %v887 = vunpack.c.h.b16 %v472
        %v888 = vunpack.c.l.b16 %v473
        %v889 = vunpack.c.h.b16 %v473
        %v890 = vunpack.c.l.b16 %v474
        %v891 = vunpack.c.h.b16 %v474
        %v892 = vunpack.c.l.b16 %v475
        %v893 = vunpack.c.h.b16 %v475
        %v894 = vunpack.c.l.b16 %v476
        %v895 = vunpack.c.h.b16 %v476
        %v896 = vunpack.c.l.b16 %v477
        %v897 = vunpack.c.h.b16 %v477
        %v898 = vunpack.c.l.b16 %v478
        %v899 = vunpack.c.h.b16 %v478
        %v900 = vunpack.c.l.b16 %v479
        %v901 = vunpack.c.h.b16 %v479
        %v902 = vunpack.c.l.b16 %v480
        %v903 = vunpack.c.h.b16 %v480
        %v904 = vunpack.c.l.b16 %v481
        %v905 = vunpack.c.h.b16 %v481
        %v906 = vunpack.c.l.b16 %v482
        %v907 = vunpack.c.h.b16 %v482
        %v908 = vunpack.c.l.b16 %v483
        %v909 = vunpack.c.h.b16 %v483
        %v910 = vunpack.c.l.b16 %v484
        %v911 = vunpack.c.h.b16 %v484
        %v912 = vunpack.c.l.b16 %v485
        %v913 = vunpack.c.h.b16 %v485
        %v914 = vunpack.c.l.b16 %v486
        %v915 = vunpack.c.h.b16 %v486
        %v916 = vunpack.c.l.b16 %v487
        %v917 = vunpack.c.h.b16 %v487
        %v918 = vunpack.c.l.b16 %v488
        %v919 = vunpack.c.h.b16 %v488
        %v920 = vunpack.c.l.b16 %v489
        %v921 = vunpack.c.h.b16 %v489
        %v922 = vunpack.c.l.b16 %v490
        %v923 = vunpack.c.h.b16 %v490
        %v924 = vunpack.c.l.b16 %v491
        %v925 = vunpack.c.h.b16 %v491
        %v926 = vunpack.c.l.b16 %v492
        %v927 = vunpack.c.h.b16 %v492
        %v928 = vunpack.c.l.b16 %v493
        %v929 = vunpack.c.h.b16 %v493
        %v930 = vunpack.c.l.b16 %v494
        %v931 = vunpack.c.h.b16 %v494
        %v932 = vunpack.c.l.b16 %v495
        %v933 = vunpack.c.h.b16 %v495
        %v934 = vunpack.c.l.b16 %v496
        %v935 = vunpack.c.h.b16 %v496
        %v936 = vunpack.c.l.b16 %v497
        %v937 = vunpack.c.h.b16 %v497
        %v938 = vunpack.c.l.b16 %v498
        %v939 = vunpack.c.h.b16 %v498
        %v940 = vunpack.c.l.b16 %v499
        %v941 = vunpack.c.h.b16 %v499
        %v942 = vunpack.c.l.b16 %v500
        %v943 = vunpack.c.h.b16 %v500
        %v944 = vunpack.c.l.b16 %v501
        %v945 = vunpack.c.h.b16 %v501
        %v946 = vunpack.c.l.b16 %v502
        %v947 = vunpack.c.h.b16 %v502
        %v948 = vunpack.c.l.b16 %v503
        %v949 = vunpack.c.h.b16 %v503
        %v950 = vunpack.c.l.b16 %v504
        %v951 = vunpack.c.h.b16 %v504
        %v952 = vunpack.c.l.b16 %v505
        %v953 = vunpack.c.h.b16 %v505
        %v954 = vunpack.c.l.b16 %v506
        %v955 = vunpack.c.h.b16 %v506
        %v956 = vunpack.c.l.b16 %v507
        %v957 = vunpack.c.h.b16 %v507
        %v958 = vunpack.c.l.b16 %v508
        %v959 = vunpack.c.h.b16 %v508
        %v960 = vunpack.c.l.b16 %v509
        %v961 = vunpack.c.h.b16 %v509
        %v962 = vunpack.c.l.b16 %v510
        %v963 = vunpack.c.h.b16 %v510
        %v964 = vunpack.c.l.b16 %v511
        %v965 = vunpack.c.h.b16 %v511
        %v966 = vpack.c.b16 %v778, %v774
        %v967 = vpack.c.b16 %v779, %v775
        %v968 = vpack.c.b16 %v780, %v776
        %v969 = vpack.c.b16 %v781, %v777
        %v970 = vpack.c.b16 %v786, %v782
        %v971 = vpack.c.b16 %v787, %v783
        %v972 = vpack.c.b16 %v788, %v784
        %v973 = vpack.c.b16 %v789, %v785
        %v974 = vpack.c.b16 %v794, %v790
        %v975 = vpack.c.b16 %v795, %v791
        %v976 = vpack.c.b16 %v796, %v792
        %v977 = vpack.c.b16 %v797, %v793
        %v978 = vpack.c.b16 %v802, %v798
        %v979 = vpack.c.b16 %v803, %v799
        %v980 = vpack.c.b16 %v804, %v800
        %v981 = vpack.c.b16 %v805, %v801
        %v982 = vpack.c.b16 %v810, %v806
        %v983 = vpack.c.b16 %v811, %v807
        %v984 = vpack.c.b16 %v812, %v808
        %v985 = vpack.c.b16 %v813, %v809
        %v986 = vpack.c.b16 %v818, %v814
        %v987 = vpack.c.b16 %v819, %v815
        %v988 = vpack.c.b16 %v820, %v816
        %v989 = vpack.c.b16 %v821, %v817
        %v990 = vpack.c.b16 %v826, %v822
        %v991 = vpack.c.b16 %v827, %v823
        %v992 = vpack.c.b16 %v828, %v824
        %v993 = vpack.c.b16 %v829, %v825
        %v994 = vpack.c.b16 %v834, %v830
        %v995 = vpack.c.b16 %v835, %v831
        %v996 = vpack.c.b16 %v836, %v832
        %v997 = vpack.c.b16 %v837, %v833
        %v998 = vpack.c.b16 %v842, %v838
        %v999 = vpack.c.b16 %v843, %v839
        %v1000 = vpack.c.b16 %v844, %v840
        %v1001 = vpack.c.b16 %v845, %v841
        %v1002 = vpack.c.b16 %v850, %v846
        %v1003 = vpack.c.b16 %v851, %v847
        %v1004 = vpack.c.b16 %v852, %v848
        %v1005 = vpack.c.b16 %v853, %v849
        %v1006 = vpack.c.b16 %v858, %v854
        %v1007 = vpack.c.b16 %v859, %v855
        %v1008 = vpack.c.b16 %v860, %v856
        %v1009 = vpack.c.b16 %v861, %v857
        %v1010 = vpack.c.b16 %v866, %v862
        %v1011 = vpack.c.b16 %v867, %v863
        %v1012 = vpack.c.b16 %v868, %v864
        %v1013 = vpack.c.b16 %v869, %v865
        %v1014 = vpack.c.b16 %v874, %v870
        %v1015 = vpack.c.b16 %v875, %v871
        %v1016 = vpack.c.b16 %v876, %v872
        %v1017 = vpack.c.b16 %v877, %v873
        %v1018 = vpack.c.b16 %v882, %v878
        %v1019 = vpack.c.b16 %v883, %v879
        %v1020 = vpack.c.b16 %v884, %v880
        %v1021 = vpack.c.b16 %v885, %v881
        %v1022 = vpack.c.b16 %v890, %v886
        %v1023 = vpack.c.b16 %v891, %v887
        %v1024 = vpack.c.b16 %v892, %v888
        %v1025 = vpack.c.b16 %v893, %v889
        %v1026 = vpack.c.b16 %v898, %v894
        %v1027 = vpack.c.b16 %v899, %v895
        %v1028 = vpack.c.b16 %v900, %v896
        %v1029 = vpack.c.b16 %v901, %v897
        %v1030 = vpack.c.b16 %v906, %v902
        %v1031 = vpack.c.b16 %v907, %v903
        %v1032 = vpack.c.b16 %v908, %v904
        %v1033 = vpack.c.b16 %v909, %v905
        %v1034 = vpack.c.b16 %v914, %v910
        %v1035 = vpack.c.b16 %v915, %v911
        %v1036 = vpack.c.b16 %v916, %v912
        %v1037 = vpack.c.b16 %v917, %v913
        %v1038 = vpack.c.b16 %v922, %v918
        %v1039 = vpack.c.b16 %v923, %v919
        %v1040 = vpack.c.b16 %v924, %v920
        %v1041 = vpack.c.b16 %v925, %v921
        %v1042 = vpack.c.b16 %v930, %v926
        %v1043 = vpack.c.b16 %v931, %v927
        %v1044 = vpack.c.b16 %v932, %v928
        %v1045 = vpack.c.b16 %v933, %v929
        %v1046 = vpack.c.b16 %v938, %v934
        %v1047 = vpack.c.b16 %v939, %v935
        %v1048 = vpack.c.b16 %v940, %v936
        %v1049 = vpack.c.b16 %v941, %v937
        %v1050 = vpack.c.b16 %v946, %v942
        %v1051 = vpack.c.b16 %v947, %v943
        %v1052 = vpack.c.b16 %v948, %v944
        %v1053 = vpack.c.b16 %v949, %v945
        %v1054 = vpack.c.b16 %v954, %v950
        %v1055 = vpack.c.b16 %v955, %v951
        %v1056 = vpack.c.b16 %v956, %v952
        %v1057 = vpack.c.b16 %v957, %v953
        %v1058 = vpack.c.b16 %v962, %v958
        %v1059 = vpack.c.b16 %v963, %v959
        %v1060 = vpack.c.b16 %v964, %v960
        %v1061 = vpack.c.b16 %v965, %v961
        %1158 = vmatprep.subr.bf16.mxu0 %v995
        %1159 = vmatpush1.bf16.msra.mxu0 %v994
        %1160 = vmatprep.subr.bf16.mxu0 %v991
        %1161 = vmatpush1.bf16.msra.mxu0 %v990
        %1162 = vmatprep.subr.bf16.mxu0 %v987
        %1163 = vmatpush1.bf16.msra.mxu0 %v986
        %1164 = vmatprep.subr.bf16.mxu0 %v983
        %1165 = vmatpush1.bf16.msra.mxu0 %v982
        %1166 = vmatprep.subr.bf16.mxu0 %v979
        %1167 = vmatpush1.bf16.msra.mxu0 %v978
        %1168 = vmatprep.subr.bf16.mxu0 %v975
        %1169 = vmatpush1.bf16.msra.mxu0 %v974
        %1170 = vmatprep.subr.bf16.mxu0 %v971
        %1171 = vmatpush1.bf16.msra.mxu0 %v970
        %1172 = vmatprep.subr.bf16.mxu0 %v967
        %1173 = vmatpush1.bf16.msra.mxu0 %v966
        %1174 = vmatprep.subr.bf16.mxu0 %v1027
        %1175 = vmatpush2.bf16.msra.mxu0 %v1026
        %1176 = vmatprep.subr.bf16.mxu0 %v1023
        %1177 = vmatpush2.bf16.msra.mxu0 %v1022
        %1178 = vmatprep.subr.bf16.mxu0 %v1019
        %1179 = vmatpush2.bf16.msra.mxu0 %v1018
        %1180 = vmatprep.subr.bf16.mxu0 %v1015
        %1181 = vmatpush2.bf16.msra.mxu0 %v1014
        %1182 = vmatprep.subr.bf16.mxu0 %v1011
        %1183 = vmatpush2.bf16.msra.mxu0 %v1010
        %1184 = vmatprep.subr.bf16.mxu0 %v1007
        %1185 = vmatpush2.bf16.msra.mxu0 %v1006
        %1186 = vmatprep.subr.bf16.mxu0 %v1003
        %1187 = vmatpush2.bf16.msra.mxu0 %v1002
        %1188 = vmatprep.subr.bf16.mxu0 %v999
        %1189 = vmatpush2.bf16.msra.mxu0 %v998
        %1190 = vmatprep.mubr.bf16.mxu0 %v625
        %1191 = vmatmul.mubr.bf16.gmra.mxu0 %v624
        %v1192 = vpop.f32.mrf.mxu0
        %v1193 = vadd.f32 %v517, %v1192
        %v1194 = vpop.f32.mrf.mxu0
        %v1195 = vadd.f32 %v521, %v1194
        %v1196 = vpop.f32.mrf.mxu0
        %v1197 = vadd.f32 %v517, %v1196
        %v1198 = vpop.f32.mrf.mxu0
        %v1199 = vadd.f32 %v521, %v1198
        %1200 = vmatprep.mubr.bf16.mxu0 %v628
        %1201 = vmatmul.mubr.bf16.gmra.mxu0 %v627
        %v1202 = vpop.f32.mrf.mxu0
        %v1203 = vadd.f32 %v517, %v1202
        %v1204 = vpop.f32.mrf.mxu0
        %v1205 = vadd.f32 %v521, %v1204
        %v1206 = vpop.f32.mrf.mxu0
        %v1207 = vadd.f32 %v517, %v1206
        %v1208 = vpop.f32.mrf.mxu0
        %v1209 = vadd.f32 %v521, %v1208
        %1210 = vmatprep.mubr.bf16.mxu0 %v631
        %1211 = vmatmul.mubr.bf16.gmra.mxu0 %v630
        %v1212 = vpop.f32.mrf.mxu0
        %v1213 = vadd.f32 %v517, %v1212
        %v1214 = vpop.f32.mrf.mxu0
        %v1215 = vadd.f32 %v521, %v1214
        %v1216 = vpop.f32.mrf.mxu0
        %v1217 = vadd.f32 %v517, %v1216
        %v1218 = vpop.f32.mrf.mxu0
        %v1219 = vadd.f32 %v521, %v1218
        %1220 = vmatprep.mubr.bf16.mxu0 %v634
        %1221 = vmatmul.mubr.bf16.gmra.mxu0 %v633
        %v1222 = vpop.f32.mrf.mxu0
        %v1223 = vadd.f32 %v517, %v1222
        %v1224 = vpop.f32.mrf.mxu0
        %v1225 = vadd.f32 %v521, %v1224
        %v1226 = vpop.f32.mrf.mxu0
        %v1227 = vadd.f32 %v517, %v1226
        %v1228 = vpop.f32.mrf.mxu0
        %v1229 = vadd.f32 %v521, %v1228
        %1230 = vmatprep.mubr.bf16.mxu0 %v637
        %1231 = vmatmul.mubr.bf16.gmra.mxu0 %v636
        %v1232 = vpop.f32.mrf.mxu0
        %v1233 = vadd.f32 %v517, %v1232
        %v1234 = vpop.f32.mrf.mxu0
        %v1235 = vadd.f32 %v521, %v1234
        %v1236 = vpop.f32.mrf.mxu0
        %v1237 = vadd.f32 %v517, %v1236
        %v1238 = vpop.f32.mrf.mxu0
        %v1239 = vadd.f32 %v521, %v1238
        %1240 = vmatprep.mubr.bf16.mxu0 %v640
        %1241 = vmatmul.mubr.bf16.gmra.mxu0 %v639
        %v1242 = vpop.f32.mrf.mxu0
        %v1243 = vadd.f32 %v517, %v1242
        %v1244 = vpop.f32.mrf.mxu0
        %v1245 = vadd.f32 %v521, %v1244
        %v1246 = vpop.f32.mrf.mxu0
        %v1247 = vadd.f32 %v517, %v1246
        %v1248 = vpop.f32.mrf.mxu0
        %v1249 = vadd.f32 %v521, %v1248
        %1250 = vmatprep.mubr.bf16.mxu0 %v643
        %1251 = vmatmul.mubr.bf16.gmra.mxu0 %v642
        %v1252 = vpop.f32.mrf.mxu0
        %v1253 = vadd.f32 %v517, %v1252
        %v1254 = vpop.f32.mrf.mxu0
        %v1255 = vadd.f32 %v521, %v1254
        %v1256 = vpop.f32.mrf.mxu0
        %v1257 = vadd.f32 %v517, %v1256
        %v1258 = vpop.f32.mrf.mxu0
        %v1259 = vadd.f32 %v521, %v1258
        %1260 = vmatprep.mubr.bf16.mxu0 %v646
        %1261 = vmatmul.mubr.bf16.gmra.mxu0 %v645
        %v1262 = vpop.f32.mrf.mxu0
        %v1263 = vadd.f32 %v517, %v1262
        %v1264 = vpop.f32.mrf.mxu0
        %v1265 = vadd.f32 %v521, %v1264
        %v1266 = vpop.f32.mrf.mxu0
        %v1267 = vadd.f32 %v517, %v1266
        %v1268 = vpop.f32.mrf.mxu0
        %v1269 = vadd.f32 %v521, %v1268
        %1270 = vmatprep.mubr.bf16.mxu0 %v649
        %1271 = vmatmul.mubr.bf16.gmra.mxu0 %v648
        %v1272 = vpop.f32.mrf.mxu0
        %v1273 = vadd.f32 %v517, %v1272
        %v1274 = vpop.f32.mrf.mxu0
        %v1275 = vadd.f32 %v521, %v1274
        %v1276 = vpop.f32.mrf.mxu0
        %v1277 = vadd.f32 %v517, %v1276
        %v1278 = vpop.f32.mrf.mxu0
        %v1279 = vadd.f32 %v521, %v1278
        %1280 = vdwg.mxu0
        %1281 = vmatprep.subr.bf16.mxu0 %v1059
        %1282 = vmatpush1.bf16.msra.mxu0 %v1058
        %1283 = vmatprep.subr.bf16.mxu0 %v1055
        %1284 = vmatpush1.bf16.msra.mxu0 %v1054
        %1285 = vmatprep.subr.bf16.mxu0 %v1051
        %1286 = vmatpush1.bf16.msra.mxu0 %v1050
        %1287 = vmatprep.subr.bf16.mxu0 %v1047
        %1288 = vmatpush1.bf16.msra.mxu0 %v1046
        %1289 = vmatprep.subr.bf16.mxu0 %v1043
        %1290 = vmatpush1.bf16.msra.mxu0 %v1042
        %1291 = vmatprep.subr.bf16.mxu0 %v1039
        %1292 = vmatpush1.bf16.msra.mxu0 %v1038
        %1293 = vmatprep.subr.bf16.mxu0 %v1035
        %1294 = vmatpush1.bf16.msra.mxu0 %v1034
        %1295 = vmatprep.subr.bf16.mxu0 %v1031
        %1296 = vmatpush1.bf16.msra.mxu0 %v1030
        %1297 = vmatprep.subr.bf16.mxu0 0
        %1298 = vmatpush2.bf16.msra.mxu0 0
        %1299 = vmatprep.subr.bf16.mxu0 0
        %1300 = vmatpush2.bf16.msra.mxu0 0
        %1301 = vmatprep.subr.bf16.mxu0 0
        %1302 = vmatpush2.bf16.msra.mxu0 0
        %1303 = vmatprep.subr.bf16.mxu0 0
        %1304 = vmatpush2.bf16.msra.mxu0 0
        %1305 = vmatprep.subr.bf16.mxu0 0
        %1306 = vmatpush2.bf16.msra.mxu0 0
        %1307 = vmatprep.subr.bf16.mxu0 0
        %1308 = vmatpush2.bf16.msra.mxu0 0
        %1309 = vmatprep.subr.bf16.mxu0 0
        %1310 = vmatpush2.bf16.msra.mxu0 0
        %1311 = vmatprep.subr.bf16.mxu0 0
        %1312 = vmatpush2.bf16.msra.mxu0 0
        %1313 = vmatprep.mubr.bf16.mxu0 0
        %1314 = vmatmul.mubr.bf16.gmra.mxu0 %v626
        %v1315 = vpop.f32.mrf.mxu0
        %v1316 = vadd.f32 %v1193, %v1315
        %v1317 = vpop.f32.mrf.mxu0
        %v1318 = vadd.f32 %v1195, %v1317
        %v1319 = vpop.f32.mrf.mxu0
        %v1320 = vadd.f32 %v1197, %v1319
        %v1321 = vpop.f32.mrf.mxu0
        %v1322 = vadd.f32 %v1199, %v1321
        %1323 = vmatprep.mubr.bf16.mxu0 0
        %1324 = vmatmul.mubr.bf16.gmra.mxu0 %v629
        %v1325 = vpop.f32.mrf.mxu0
        %v1326 = vadd.f32 %v1203, %v1325
        %v1327 = vpop.f32.mrf.mxu0
        %v1328 = vadd.f32 %v1205, %v1327
        %v1329 = vpop.f32.mrf.mxu0
        %v1330 = vadd.f32 %v1207, %v1329
        %v1331 = vpop.f32.mrf.mxu0
        %v1332 = vadd.f32 %v1209, %v1331
        %1333 = vmatprep.mubr.bf16.mxu0 0
        %1334 = vmatmul.mubr.bf16.gmra.mxu0 %v632
        %v1335 = vpop.f32.mrf.mxu0
        %v1336 = vadd.f32 %v1213, %v1335
        %v1337 = vpop.f32.mrf.mxu0
        %v1338 = vadd.f32 %v1215, %v1337
        %v1339 = vpop.f32.mrf.mxu0
        %v1340 = vadd.f32 %v1217, %v1339
        %v1341 = vpop.f32.mrf.mxu0
        %v1342 = vadd.f32 %v1219, %v1341
        %1343 = vmatprep.mubr.bf16.mxu0 0
        %1344 = vmatmul.mubr.bf16.gmra.mxu0 %v635
        %v1345 = vpop.f32.mrf.mxu0
        %v1346 = vadd.f32 %v1223, %v1345
        %v1347 = vpop.f32.mrf.mxu0
        %v1348 = vadd.f32 %v1225, %v1347
        %v1349 = vpop.f32.mrf.mxu0
        %v1350 = vadd.f32 %v1227, %v1349
        %v1351 = vpop.f32.mrf.mxu0
        %v1352 = vadd.f32 %v1229, %v1351
        %1353 = vmatprep.mubr.bf16.mxu0 0
        %1354 = vmatmul.mubr.bf16.gmra.mxu0 %v638
        %v1355 = vpop.f32.mrf.mxu0
        %v1356 = vadd.f32 %v1233, %v1355
        %v1357 = vpop.f32.mrf.mxu0
        %v1358 = vadd.f32 %v1235, %v1357
        %v1359 = vpop.f32.mrf.mxu0
        %v1360 = vadd.f32 %v1237, %v1359
        %v1361 = vpop.f32.mrf.mxu0
        %v1362 = vadd.f32 %v1239, %v1361
        %1363 = vmatprep.mubr.bf16.mxu0 0
        %1364 = vmatmul.mubr.bf16.gmra.mxu0 %v641
        %v1365 = vpop.f32.mrf.mxu0
        %v1366 = vadd.f32 %v1243, %v1365
        %v1367 = vpop.f32.mrf.mxu0
        %v1368 = vadd.f32 %v1245, %v1367
        %v1369 = vpop.f32.mrf.mxu0
        %v1370 = vadd.f32 %v1247, %v1369
        %v1371 = vpop.f32.mrf.mxu0
        %v1372 = vadd.f32 %v1249, %v1371
        %1373 = vmatprep.mubr.bf16.mxu0 0
        %1374 = vmatmul.mubr.bf16.gmra.mxu0 %v644
        %v1375 = vpop.f32.mrf.mxu0
        %v1376 = vadd.f32 %v1253, %v1375
        %v1377 = vpop.f32.mrf.mxu0
        %v1378 = vadd.f32 %v1255, %v1377
        %v1379 = vpop.f32.mrf.mxu0
        %v1380 = vadd.f32 %v1257, %v1379
        %v1381 = vpop.f32.mrf.mxu0
        %v1382 = vadd.f32 %v1259, %v1381
        %1383 = vmatprep.mubr.bf16.mxu0 0
        %1384 = vmatmul.mubr.bf16.gmra.mxu0 %v647
        %v1385 = vpop.f32.mrf.mxu0
        %v1386 = vadd.f32 %v1263, %v1385
        %v1387 = vpop.f32.mrf.mxu0
        %v1388 = vadd.f32 %v1265, %v1387
        %v1389 = vpop.f32.mrf.mxu0
        %v1390 = vadd.f32 %v1267, %v1389
        %v1391 = vpop.f32.mrf.mxu0
        %v1392 = vadd.f32 %v1269, %v1391
        %1393 = vmatprep.mubr.bf16.mxu0 0
        %1394 = vmatmul.mubr.bf16.gmra.mxu0 %v650
        %v1395 = vpop.f32.mrf.mxu0
        %v1396 = vadd.f32 %v1273, %v1395
        %v1397 = vpop.f32.mrf.mxu0
        %v1398 = vadd.f32 %v1275, %v1397
        %v1399 = vpop.f32.mrf.mxu0
        %v1400 = vadd.f32 %v1277, %v1399
        %v1401 = vpop.f32.mrf.mxu0
        %v1402 = vadd.f32 %v1279, %v1401
        %1403 = vdwg.mxu0
        %1404 = vmatprep.subr.bf16.mxu0 %v997
        %1405 = vmatpush1.bf16.msra.mxu0 %v996
        %1406 = vmatprep.subr.bf16.mxu0 %v993
        %1407 = vmatpush1.bf16.msra.mxu0 %v992
        %1408 = vmatprep.subr.bf16.mxu0 %v989
        %1409 = vmatpush1.bf16.msra.mxu0 %v988
        %1410 = vmatprep.subr.bf16.mxu0 %v985
        %1411 = vmatpush1.bf16.msra.mxu0 %v984
        %1412 = vmatprep.subr.bf16.mxu0 %v981
        %1413 = vmatpush1.bf16.msra.mxu0 %v980
        %1414 = vmatprep.subr.bf16.mxu0 %v977
        %1415 = vmatpush1.bf16.msra.mxu0 %v976
        %1416 = vmatprep.subr.bf16.mxu0 %v973
        %1417 = vmatpush1.bf16.msra.mxu0 %v972
        %1418 = vmatprep.subr.bf16.mxu0 %v969
        %1419 = vmatpush1.bf16.msra.mxu0 %v968
        %1420 = vmatprep.subr.bf16.mxu0 %v1029
        %1421 = vmatpush2.bf16.msra.mxu0 %v1028
        %1422 = vmatprep.subr.bf16.mxu0 %v1025
        %1423 = vmatpush2.bf16.msra.mxu0 %v1024
        %1424 = vmatprep.subr.bf16.mxu0 %v1021
        %1425 = vmatpush2.bf16.msra.mxu0 %v1020
        %1426 = vmatprep.subr.bf16.mxu0 %v1017
        %1427 = vmatpush2.bf16.msra.mxu0 %v1016
        %1428 = vmatprep.subr.bf16.mxu0 %v1013
        %1429 = vmatpush2.bf16.msra.mxu0 %v1012
        %1430 = vmatprep.subr.bf16.mxu0 %v1009
        %1431 = vmatpush2.bf16.msra.mxu0 %v1008
        %1432 = vmatprep.subr.bf16.mxu0 %v1005
        %1433 = vmatpush2.bf16.msra.mxu0 %v1004
        %1434 = vmatprep.subr.bf16.mxu0 %v1001
        %1435 = vmatpush2.bf16.msra.mxu0 %v1000
        %1436 = vmatprep.mubr.bf16.mxu0 %v625
        %1437 = vmatmul.mubr.bf16.gmra.mxu0 %v624
        %v1438 = vpop.f32.mrf.mxu0
        %v1439 = vadd.f32 %v525, %v1438
        %v1440 = vpop.f32.mrf.mxu0
        %v1441 = vadd.f32 %v529, %v1440
        %v1442 = vpop.f32.mrf.mxu0
        %v1443 = vadd.f32 %v525, %v1442
        %v1444 = vpop.f32.mrf.mxu0
        %v1445 = vadd.f32 %v529, %v1444
        %1446 = vmatprep.mubr.bf16.mxu0 %v628
        %1447 = vmatmul.mubr.bf16.gmra.mxu0 %v627
        %v1448 = vpop.f32.mrf.mxu0
        %v1449 = vadd.f32 %v525, %v1448
        %v1450 = vpop.f32.mrf.mxu0
        %v1451 = vadd.f32 %v529, %v1450
        %v1452 = vpop.f32.mrf.mxu0
        %v1453 = vadd.f32 %v525, %v1452
        %v1454 = vpop.f32.mrf.mxu0
        %v1455 = vadd.f32 %v529, %v1454
        %1456 = vmatprep.mubr.bf16.mxu0 %v631
        %1457 = vmatmul.mubr.bf16.gmra.mxu0 %v630
        %v1458 = vpop.f32.mrf.mxu0
        %v1459 = vadd.f32 %v525, %v1458
        %v1460 = vpop.f32.mrf.mxu0
        %v1461 = vadd.f32 %v529, %v1460
        %v1462 = vpop.f32.mrf.mxu0
        %v1463 = vadd.f32 %v525, %v1462
        %v1464 = vpop.f32.mrf.mxu0
        %v1465 = vadd.f32 %v529, %v1464
        %1466 = vmatprep.mubr.bf16.mxu0 %v634
        %1467 = vmatmul.mubr.bf16.gmra.mxu0 %v633
        %v1468 = vpop.f32.mrf.mxu0
        %v1469 = vadd.f32 %v525, %v1468
        %v1470 = vpop.f32.mrf.mxu0
        %v1471 = vadd.f32 %v529, %v1470
        %v1472 = vpop.f32.mrf.mxu0
        %v1473 = vadd.f32 %v525, %v1472
        %v1474 = vpop.f32.mrf.mxu0
        %v1475 = vadd.f32 %v529, %v1474
        %1476 = vmatprep.mubr.bf16.mxu0 %v637
        %1477 = vmatmul.mubr.bf16.gmra.mxu0 %v636
        %v1478 = vpop.f32.mrf.mxu0
        %v1479 = vadd.f32 %v525, %v1478
        %v1480 = vpop.f32.mrf.mxu0
        %v1481 = vadd.f32 %v529, %v1480
        %v1482 = vpop.f32.mrf.mxu0
        %v1483 = vadd.f32 %v525, %v1482
        %v1484 = vpop.f32.mrf.mxu0
        %v1485 = vadd.f32 %v529, %v1484
        %1486 = vmatprep.mubr.bf16.mxu0 %v640
        %1487 = vmatmul.mubr.bf16.gmra.mxu0 %v639
        %v1488 = vpop.f32.mrf.mxu0
        %v1489 = vadd.f32 %v525, %v1488
        %v1490 = vpop.f32.mrf.mxu0
        %v1491 = vadd.f32 %v529, %v1490
        %v1492 = vpop.f32.mrf.mxu0
        %v1493 = vadd.f32 %v525, %v1492
        %v1494 = vpop.f32.mrf.mxu0
        %v1495 = vadd.f32 %v529, %v1494
        %1496 = vmatprep.mubr.bf16.mxu0 %v643
        %1497 = vmatmul.mubr.bf16.gmra.mxu0 %v642
        %v1498 = vpop.f32.mrf.mxu0
        %v1499 = vadd.f32 %v525, %v1498
        %v1500 = vpop.f32.mrf.mxu0
        %v1501 = vadd.f32 %v529, %v1500
        %v1502 = vpop.f32.mrf.mxu0
        %v1503 = vadd.f32 %v525, %v1502
        %v1504 = vpop.f32.mrf.mxu0
        %v1505 = vadd.f32 %v529, %v1504
        %1506 = vmatprep.mubr.bf16.mxu0 %v646
        %1507 = vmatmul.mubr.bf16.gmra.mxu0 %v645
        %v1508 = vpop.f32.mrf.mxu0
        %v1509 = vadd.f32 %v525, %v1508
        %v1510 = vpop.f32.mrf.mxu0
        %v1511 = vadd.f32 %v529, %v1510
        %v1512 = vpop.f32.mrf.mxu0
        %v1513 = vadd.f32 %v525, %v1512
        %v1514 = vpop.f32.mrf.mxu0
        %v1515 = vadd.f32 %v529, %v1514
        %1516 = vmatprep.mubr.bf16.mxu0 %v649
        %1517 = vmatmul.mubr.bf16.gmra.mxu0 %v648
        %v1518 = vpop.f32.mrf.mxu0
        %v1519 = vadd.f32 %v525, %v1518
        %v1520 = vpop.f32.mrf.mxu0
        %v1521 = vadd.f32 %v529, %v1520
        %v1522 = vpop.f32.mrf.mxu0
        %v1523 = vadd.f32 %v525, %v1522
        %v1524 = vpop.f32.mrf.mxu0
        %v1525 = vadd.f32 %v529, %v1524
        %1526 = vdwg.mxu0
        %1527 = vmatprep.subr.bf16.mxu0 %v1061
        %1528 = vmatpush1.bf16.msra.mxu0 %v1060
        %1529 = vmatprep.subr.bf16.mxu0 %v1057
        %1530 = vmatpush1.bf16.msra.mxu0 %v1056
        %1531 = vmatprep.subr.bf16.mxu0 %v1053
        %1532 = vmatpush1.bf16.msra.mxu0 %v1052
        %1533 = vmatprep.subr.bf16.mxu0 %v1049
        %1534 = vmatpush1.bf16.msra.mxu0 %v1048
        %1535 = vmatprep.subr.bf16.mxu0 %v1045
        %1536 = vmatpush1.bf16.msra.mxu0 %v1044
        %1537 = vmatprep.subr.bf16.mxu0 %v1041
        %1538 = vmatpush1.bf16.msra.mxu0 %v1040
        %1539 = vmatprep.subr.bf16.mxu0 %v1037
        %1540 = vmatpush1.bf16.msra.mxu0 %v1036
        %1541 = vmatprep.subr.bf16.mxu0 %v1033
        %1542 = vmatpush1.bf16.msra.mxu0 %v1032
        %1543 = vmatprep.subr.bf16.mxu0 0
        %1544 = vmatpush2.bf16.msra.mxu0 0
        %1545 = vmatprep.subr.bf16.mxu0 0
        %1546 = vmatpush2.bf16.msra.mxu0 0
        %1547 = vmatprep.subr.bf16.mxu0 0
        %1548 = vmatpush2.bf16.msra.mxu0 0
        %1549 = vmatprep.subr.bf16.mxu0 0
        %1550 = vmatpush2.bf16.msra.mxu0 0
        %1551 = vmatprep.subr.bf16.mxu0 0
        %1552 = vmatpush2.bf16.msra.mxu0 0
        %1553 = vmatprep.subr.bf16.mxu0 0
        %1554 = vmatpush2.bf16.msra.mxu0 0
        %1555 = vmatprep.subr.bf16.mxu0 0
        %1556 = vmatpush2.bf16.msra.mxu0 0
        %1557 = vmatprep.subr.bf16.mxu0 0
        %1558 = vmatpush2.bf16.msra.mxu0 0
        %1559 = vmatprep.mubr.bf16.mxu0 0
        %1560 = vmatmul.mubr.bf16.gmra.mxu0 %v626
        %v1561 = vpop.f32.mrf.mxu0
        %v1562 = vadd.f32 %v1439, %v1561
        %v1563 = vpop.f32.mrf.mxu0
        %v1564 = vadd.f32 %v1441, %v1563
        %v1565 = vpop.f32.mrf.mxu0
        %v1566 = vadd.f32 %v1443, %v1565
        %v1567 = vpop.f32.mrf.mxu0
        %v1568 = vadd.f32 %v1445, %v1567
        %1569 = vmatprep.mubr.bf16.mxu0 0
        %1570 = vmatmul.mubr.bf16.gmra.mxu0 %v629
        %v1571 = vpop.f32.mrf.mxu0
        %v1572 = vadd.f32 %v1449, %v1571
        %v1573 = vpop.f32.mrf.mxu0
        %v1574 = vadd.f32 %v1451, %v1573
        %v1575 = vpop.f32.mrf.mxu0
        %v1576 = vadd.f32 %v1453, %v1575
        %v1577 = vpop.f32.mrf.mxu0
        %v1578 = vadd.f32 %v1455, %v1577
        %1579 = vmatprep.mubr.bf16.mxu0 0
        %1580 = vmatmul.mubr.bf16.gmra.mxu0 %v632
        %v1581 = vpop.f32.mrf.mxu0
        %v1582 = vadd.f32 %v1459, %v1581
        %v1583 = vpop.f32.mrf.mxu0
        %v1584 = vadd.f32 %v1461, %v1583
        %v1585 = vpop.f32.mrf.mxu0
        %v1586 = vadd.f32 %v1463, %v1585
        %v1587 = vpop.f32.mrf.mxu0
        %v1588 = vadd.f32 %v1465, %v1587
        %1589 = vmatprep.mubr.bf16.mxu0 0
        %1590 = vmatmul.mubr.bf16.gmra.mxu0 %v635
        %v1591 = vpop.f32.mrf.mxu0
        %v1592 = vadd.f32 %v1469, %v1591
        %v1593 = vpop.f32.mrf.mxu0
        %v1594 = vadd.f32 %v1471, %v1593
        %v1595 = vpop.f32.mrf.mxu0
        %v1596 = vadd.f32 %v1473, %v1595
        %v1597 = vpop.f32.mrf.mxu0
        %v1598 = vadd.f32 %v1475, %v1597
        %1599 = vmatprep.mubr.bf16.mxu0 0
        %1600 = vmatmul.mubr.bf16.gmra.mxu0 %v638
        %v1601 = vpop.f32.mrf.mxu0
        %v1602 = vadd.f32 %v1479, %v1601
        %v1603 = vpop.f32.mrf.mxu0
        %v1604 = vadd.f32 %v1481, %v1603
        %v1605 = vpop.f32.mrf.mxu0
        %v1606 = vadd.f32 %v1483, %v1605
        %v1607 = vpop.f32.mrf.mxu0
        %v1608 = vadd.f32 %v1485, %v1607
        %1609 = vmatprep.mubr.bf16.mxu0 0
        %1610 = vmatmul.mubr.bf16.gmra.mxu0 %v641
        %v1611 = vpop.f32.mrf.mxu0
        %v1612 = vadd.f32 %v1489, %v1611
        %v1613 = vpop.f32.mrf.mxu0
        %v1614 = vadd.f32 %v1491, %v1613
        %v1615 = vpop.f32.mrf.mxu0
        %v1616 = vadd.f32 %v1493, %v1615
        %v1617 = vpop.f32.mrf.mxu0
        %v1618 = vadd.f32 %v1495, %v1617
        %1619 = vmatprep.mubr.bf16.mxu0 0
        %1620 = vmatmul.mubr.bf16.gmra.mxu0 %v644
        %v1621 = vpop.f32.mrf.mxu0
        %v1622 = vadd.f32 %v1499, %v1621
        %v1623 = vpop.f32.mrf.mxu0
        %v1624 = vadd.f32 %v1501, %v1623
        %v1625 = vpop.f32.mrf.mxu0
        %v1626 = vadd.f32 %v1503, %v1625
        %v1627 = vpop.f32.mrf.mxu0
        %v1628 = vadd.f32 %v1505, %v1627
        %1629 = vmatprep.mubr.bf16.mxu0 0
        %1630 = vmatmul.mubr.bf16.gmra.mxu0 %v647
        %v1631 = vpop.f32.mrf.mxu0
        %v1632 = vadd.f32 %v1509, %v1631
        %v1633 = vpop.f32.mrf.mxu0
        %v1634 = vadd.f32 %v1511, %v1633
        %v1635 = vpop.f32.mrf.mxu0
        %v1636 = vadd.f32 %v1513, %v1635
        %v1637 = vpop.f32.mrf.mxu0
        %v1638 = vadd.f32 %v1515, %v1637
        %1639 = vmatprep.mubr.bf16.mxu0 0
        %1640 = vmatmul.mubr.bf16.gmra.mxu0 %v650
        %v1641 = vpop.f32.mrf.mxu0
        %v1642 = vadd.f32 %v1519, %v1641
        %v1643 = vpop.f32.mrf.mxu0
        %v1644 = vadd.f32 %v1521, %v1643
        %v1645 = vpop.f32.mrf.mxu0
        %v1646 = vadd.f32 %v1523, %v1645
        %v1647 = vpop.f32.mrf.mxu0
        %v1648 = vadd.f32 %v1525, %v1647
        %1649 = vdwg.mxu0
        %v1650 = vld [vmem:[%s320] sm:$0xff]
        %v1651 = vld [vmem:[%s320 + $0x8] sm:$0xff]
        %v1652 = vld [vmem:[%s320 + $0x10] sm:$0xff]
        %v1653 = vld [vmem:[%s320 + $0x18] sm:$0xff]
        %v1654 = vld [vmem:[%s320 + $0x20] sm:$0xff]
        %v1655 = vld [vmem:[%s320 + $0x28] sm:$0xff]
        %v1656 = vld [vmem:[%s320 + $0x30] sm:$0xff]
        %v1657 = vld [vmem:[%s320 + $0x38] sm:$0xff]
        %v1658 = vld [vmem:[%s320 + $0x40] sm:$0xff]
        %v1659 = vld [vmem:[%s320 + $0x48] sm:$0xff]
        %v1660 = vld [vmem:[%s320 + $0x50] sm:$0xff]
        %v1661 = vld [vmem:[%s320 + $0x58] sm:$0xff]
        %v1662 = vld [vmem:[%s320 + $0x60] sm:$0xff]
        %v1663 = vld [vmem:[%s320 + $0x68] sm:$0xff]
        %v1664 = vld [vmem:[%s320 + $0x70] sm:$0xff]
        %v1665 = vld [vmem:[%s320 + $0x78] sm:$0xff]
        %v1666 = vld [vmem:[%s320 + $0x80] sm:$0xff]
        %v1667 = vld [vmem:[%s320 + $0x88] sm:$0xff]
        %v1668 = vld [vmem:[#allocation5] sm:$0xff]
        %v1669 = vld [vmem:[#allocation5 + $0x8] sm:$0xff]
        %v1670 = vld [vmem:[#allocation5 + $0x10] sm:$0xff]
        %v1671 = vld [vmem:[#allocation5 + $0x18] sm:$0xff]
        %v1672 = vld [vmem:[#allocation5 + $0x20] sm:$0xff]
        %v1673 = vld [vmem:[#allocation5 + $0x28] sm:$0xff]
        %v1674 = vld [vmem:[#allocation5 + $0x30] sm:$0xff]
        %v1675 = vld [vmem:[#allocation5 + $0x38] sm:$0xff]
        %v1676 = vld [vmem:[#allocation5 + $0x40] sm:$0xff]
        %v1677 = vld [vmem:[#allocation5 + $0x48] sm:$0xff]
        %v1678 = vld [vmem:[#allocation5 + $0x50] sm:$0xff]
        %v1679 = vld [vmem:[#allocation5 + $0x58] sm:$0xff]
        %v1680 = vld [vmem:[#allocation5 + $0x60] sm:$0xff]
        %v1681 = vld [vmem:[#allocation5 + $0x68] sm:$0xff]
        %v1682 = vld [vmem:[#allocation5 + $0x70] sm:$0xff]
        %v1683 = vld [vmem:[#allocation5 + $0x78] sm:$0xff]
        %v1684 = vld [vmem:[#allocation5 + $0x80] sm:$0xff]
        %v1685 = vld [vmem:[#allocation5 + $0x88] sm:$0xff]
        %s1686 = scalar_lea.vmem [#allocation5], 144
        %v1687 = vld [vmem:[%s1686] sm:$0xff]
        %v1688 = vld [vmem:[%s1686 + $0x8] sm:$0xff]
        %v1689 = vld [vmem:[%s1686 + $0x10] sm:$0xff]
        %v1690 = vld [vmem:[%s1686 + $0x18] sm:$0xff]
        %v1691 = vld [vmem:[%s1686 + $0x20] sm:$0xff]
        %v1692 = vld [vmem:[%s1686 + $0x28] sm:$0xff]
        %v1693 = vld [vmem:[%s1686 + $0x30] sm:$0xff]
        %v1694 = vld [vmem:[%s1686 + $0x38] sm:$0xff]
        %v1695 = vld [vmem:[%s1686 + $0x40] sm:$0xff]
        %v1696 = vld [vmem:[%s1686 + $0x48] sm:$0xff]
        %v1697 = vld [vmem:[%s1686 + $0x50] sm:$0xff]
        %v1698 = vld [vmem:[%s1686 + $0x58] sm:$0xff]
        %v1699 = vld [vmem:[%s1686 + $0x60] sm:$0xff]
        %v1700 = vld [vmem:[%s1686 + $0x68] sm:$0xff]
        %v1701 = vld [vmem:[%s1686 + $0x70] sm:$0xff]
        %v1702 = vld [vmem:[%s1686 + $0x78] sm:$0xff]
        %v1703 = vld [vmem:[%s1686 + $0x80] sm:$0xff]
        %v1704 = vld [vmem:[%s1686 + $0x88] sm:$0xff]
        %s1705 = scalar_lea.vmem [#allocation5], 288
        %v1706 = vld [vmem:[%s1705] sm:$0xff]
        %v1707 = vld [vmem:[%s1705 + $0x8] sm:$0xff]
        %v1708 = vld [vmem:[%s1705 + $0x10] sm:$0xff]
        %v1709 = vld [vmem:[%s1705 + $0x18] sm:$0xff]
        %v1710 = vld [vmem:[%s1705 + $0x20] sm:$0xff]
        %v1711 = vld [vmem:[%s1705 + $0x28] sm:$0xff]
        %v1712 = vld [vmem:[%s1705 + $0x30] sm:$0xff]
        %v1713 = vld [vmem:[%s1705 + $0x38] sm:$0xff]
        %v1714 = vld [vmem:[%s1705 + $0x40] sm:$0xff]
        %v1715 = vld [vmem:[%s1705 + $0x48] sm:$0xff]
        %v1716 = vld [vmem:[%s1705 + $0x50] sm:$0xff]
        %v1717 = vld [vmem:[%s1705 + $0x58] sm:$0xff]
        %v1718 = vld [vmem:[%s1705 + $0x60] sm:$0xff]
        %v1719 = vld [vmem:[%s1705 + $0x68] sm:$0xff]
        %v1720 = vld [vmem:[%s1705 + $0x70] sm:$0xff]
        %v1721 = vld [vmem:[%s1705 + $0x78] sm:$0xff]
        %v1722 = vld [vmem:[%s1705 + $0x80] sm:$0xff]
        %v1723 = vld [vmem:[%s1705 + $0x88] sm:$0xff]
        %v1724 = vmul.f32 %v1650, %v1668
        %v1725 = vmul.f32 %v1651, %v1669
        %v1726 = vmul.f32 %v1652, %v1670
        %v1727 = vmul.f32 %v1653, %v1671
        %v1728 = vmul.f32 %v1654, %v1672
        %v1729 = vmul.f32 %v1655, %v1673
        %v1730 = vmul.f32 %v1656, %v1674
        %v1731 = vmul.f32 %v1657, %v1675
        %v1732 = vmul.f32 %v1658, %v1676
        %v1733 = vmul.f32 %v1659, %v1677
        %v1734 = vmul.f32 %v1660, %v1678
        %v1735 = vmul.f32 %v1661, %v1679
        %v1736 = vmul.f32 %v1662, %v1680
        %v1737 = vmul.f32 %v1663, %v1681
        %v1738 = vmul.f32 %v1664, %v1682
        %v1739 = vmul.f32 %v1665, %v1683
        %v1740 = vmul.f32 %v1666, %v1684
        %v1741 = vmul.f32 %v1667, %v1685
        %v1742 = vadd.f32 %v1316, %v1724
        %v1743 = vadd.f32 %v1320, %v1725
        %v1744 = vadd.f32 %v1326, %v1726
        %v1745 = vadd.f32 %v1330, %v1727
        %v1746 = vadd.f32 %v1336, %v1728
        %v1747 = vadd.f32 %v1340, %v1729
        %v1748 = vadd.f32 %v1346, %v1730
        %v1749 = vadd.f32 %v1350, %v1731
        %v1750 = vadd.f32 %v1356, %v1732
        %v1751 = vadd.f32 %v1360, %v1733
        %v1752 = vadd.f32 %v1366, %v1734
        %v1753 = vadd.f32 %v1370, %v1735
        %v1754 = vadd.f32 %v1376, %v1736
        %v1755 = vadd.f32 %v1380, %v1737
        %v1756 = vadd.f32 %v1386, %v1738
        %v1757 = vadd.f32 %v1390, %v1739
        %v1758 = vadd.f32 %v1396, %v1740
        %v1759 = vadd.f32 %v1400, %v1741
        %v1760 = vxor.u32 %v1742, 2147483648
        %v1761 = vxor.u32 %v1743, 2147483648
        %v1762 = vxor.u32 %v1744, 2147483648
        %v1763 = vxor.u32 %v1745, 2147483648
        %v1764 = vxor.u32 %v1746, 2147483648
        %v1765 = vxor.u32 %v1747, 2147483648
        %v1766 = vxor.u32 %v1748, 2147483648
        %v1767 = vxor.u32 %v1749, 2147483648
        %v1768 = vxor.u32 %v1750, 2147483648
        %v1769 = vxor.u32 %v1751, 2147483648
        %v1770 = vxor.u32 %v1752, 2147483648
        %v1771 = vxor.u32 %v1753, 2147483648
        %v1772 = vxor.u32 %v1754, 2147483648
        %v1773 = vxor.u32 %v1755, 2147483648
        %v1774 = vxor.u32 %v1756, 2147483648
        %v1775 = vxor.u32 %v1757, 2147483648
        %v1776 = vxor.u32 %v1758, 2147483648
        %v1777 = vxor.u32 %v1759, 2147483648
        %v1778 = vmul.f32 %v1760, 1.442695
        %v1779 = vpow.pop %v1778
        %v1780 = vmul.f32 %v1761, 1.442695
        %v1781 = vpow.pop %v1780
        %v1782 = vmul.f32 %v1762, 1.442695
        %v1783 = vpow.pop %v1782
        %v1784 = vmul.f32 %v1763, 1.442695
        %v1785 = vpow.pop %v1784
        %v1786 = vmul.f32 %v1764, 1.442695
        %v1787 = vpow.pop %v1786
        %v1788 = vmul.f32 %v1765, 1.442695
        %v1789 = vpow.pop %v1788
        %v1790 = vmul.f32 %v1766, 1.442695
        %v1791 = vpow.pop %v1790
        %v1792 = vmul.f32 %v1767, 1.442695
        %v1793 = vpow.pop %v1792
        %v1794 = vmul.f32 %v1768, 1.442695
        %v1795 = vpow.pop %v1794
        %v1796 = vmul.f32 %v1769, 1.442695
        %v1797 = vpow.pop %v1796
        %v1798 = vmul.f32 %v1770, 1.442695
        %v1799 = vpow.pop %v1798
        %v1800 = vmul.f32 %v1771, 1.442695
        %v1801 = vpow.pop %v1800
        %v1802 = vmul.f32 %v1772, 1.442695
        %v1803 = vpow.pop %v1802
        %v1804 = vmul.f32 %v1773, 1.442695
        %v1805 = vpow.pop %v1804
        %v1806 = vmul.f32 %v1774, 1.442695
        %v1807 = vpow.pop %v1806
        %v1808 = vmul.f32 %v1775, 1.442695
        %v1809 = vpow.pop %v1808
        %v1810 = vmul.f32 %v1776, 1.442695
        %v1811 = vpow.pop %v1810
        %v1812 = vmul.f32 %v1777, 1.442695
        %v1813 = vpow.pop %v1812
        %v1814 = vadd.f32 %v1779, 1.0
        %v1815 = vadd.f32 %v1781, 1.0
        %v1816 = vadd.f32 %v1783, 1.0
        %v1817 = vadd.f32 %v1785, 1.0
        %v1818 = vadd.f32 %v1787, 1.0
        %v1819 = vadd.f32 %v1789, 1.0
        %v1820 = vadd.f32 %v1791, 1.0
        %v1821 = vadd.f32 %v1793, 1.0
        %v1822 = vadd.f32 %v1795, 1.0
        %v1823 = vadd.f32 %v1797, 1.0
        %v1824 = vadd.f32 %v1799, 1.0
        %v1825 = vadd.f32 %v1801, 1.0
        %v1826 = vadd.f32 %v1803, 1.0
        %v1827 = vadd.f32 %v1805, 1.0
        %v1828 = vadd.f32 %v1807, 1.0
        %v1829 = vadd.f32 %v1809, 1.0
        %v1830 = vadd.f32 %v1811, 1.0
        %v1831 = vadd.f32 %v1813, 1.0
        %v1832 = vrcp.pop %v1814
        %v1833 = vmul.f32 1.0, %v1832
        %v1834 = vrcp.pop %v1815
        %v1835 = vmul.f32 1.0, %v1834
        %v1836 = vrcp.pop %v1816
        %v1837 = vmul.f32 1.0, %v1836
        %v1838 = vrcp.pop %v1817
        %v1839 = vmul.f32 1.0, %v1838
        %v1840 = vrcp.pop %v1818
        %v1841 = vmul.f32 1.0, %v1840
        %v1842 = vrcp.pop %v1819
        %v1843 = vmul.f32 1.0, %v1842
        %v1844 = vrcp.pop %v1820
        %v1845 = vmul.f32 1.0, %v1844
        %v1846 = vrcp.pop %v1821
        %v1847 = vmul.f32 1.0, %v1846
        %v1848 = vrcp.pop %v1822
        %v1849 = vmul.f32 1.0, %v1848
        %v1850 = vrcp.pop %v1823
        %v1851 = vmul.f32 1.0, %v1850
        %v1852 = vrcp.pop %v1824
        %v1853 = vmul.f32 1.0, %v1852
        %v1854 = vrcp.pop %v1825
        %v1855 = vmul.f32 1.0, %v1854
        %v1856 = vrcp.pop %v1826
        %v1857 = vmul.f32 1.0, %v1856
        %v1858 = vrcp.pop %v1827
        %v1859 = vmul.f32 1.0, %v1858
        %v1860 = vrcp.pop %v1828
        %v1861 = vmul.f32 1.0, %v1860
        %v1862 = vrcp.pop %v1829
        %v1863 = vmul.f32 1.0, %v1862
        %v1864 = vrcp.pop %v1830
        %v1865 = vmul.f32 1.0, %v1864
        %v1866 = vrcp.pop %v1831
        %v1867 = vmul.f32 1.0, %v1866
        %v1868 = vmul.f32 %v1650, %v1687
        %v1869 = vmul.f32 %v1651, %v1688
        %v1870 = vmul.f32 %v1652, %v1689
        %v1871 = vmul.f32 %v1653, %v1690
        %v1872 = vmul.f32 %v1654, %v1691
        %v1873 = vmul.f32 %v1655, %v1692
        %v1874 = vmul.f32 %v1656, %v1693
        %v1875 = vmul.f32 %v1657, %v1694
        %v1876 = vmul.f32 %v1658, %v1695
        %v1877 = vmul.f32 %v1659, %v1696
        %v1878 = vmul.f32 %v1660, %v1697
        %v1879 = vmul.f32 %v1661, %v1698
        %v1880 = vmul.f32 %v1662, %v1699
        %v1881 = vmul.f32 %v1663, %v1700
        %v1882 = vmul.f32 %v1664, %v1701
        %v1883 = vmul.f32 %v1665, %v1702
        %v1884 = vmul.f32 %v1666, %v1703
        %v1885 = vmul.f32 %v1667, %v1704
        %v1886 = vadd.f32 %v1318, %v1868
        %v1887 = vadd.f32 %v1322, %v1869
        %v1888 = vadd.f32 %v1328, %v1870
        %v1889 = vadd.f32 %v1332, %v1871
        %v1890 = vadd.f32 %v1338, %v1872
        %v1891 = vadd.f32 %v1342, %v1873
        %v1892 = vadd.f32 %v1348, %v1874
        %v1893 = vadd.f32 %v1352, %v1875
        %v1894 = vadd.f32 %v1358, %v1876
        %v1895 = vadd.f32 %v1362, %v1877
        %v1896 = vadd.f32 %v1368, %v1878
        %v1897 = vadd.f32 %v1372, %v1879
        %v1898 = vadd.f32 %v1378, %v1880
        %v1899 = vadd.f32 %v1382, %v1881
        %v1900 = vadd.f32 %v1388, %v1882
        %v1901 = vadd.f32 %v1392, %v1883
        %v1902 = vadd.f32 %v1398, %v1884
        %v1903 = vadd.f32 %v1402, %v1885
        %v1904 = vxor.u32 %v1886, 2147483648
        %v1905 = vxor.u32 %v1887, 2147483648
        %v1906 = vxor.u32 %v1888, 2147483648
        %v1907 = vxor.u32 %v1889, 2147483648
        %v1908 = vxor.u32 %v1890, 2147483648
        %v1909 = vxor.u32 %v1891, 2147483648
        %v1910 = vxor.u32 %v1892, 2147483648
        %v1911 = vxor.u32 %v1893, 2147483648
        %v1912 = vxor.u32 %v1894, 2147483648
        %v1913 = vxor.u32 %v1895, 2147483648
        %v1914 = vxor.u32 %v1896, 2147483648
        %v1915 = vxor.u32 %v1897, 2147483648
        %v1916 = vxor.u32 %v1898, 2147483648
        %v1917 = vxor.u32 %v1899, 2147483648
        %v1918 = vxor.u32 %v1900, 2147483648
        %v1919 = vxor.u32 %v1901, 2147483648
        %v1920 = vxor.u32 %v1902, 2147483648
        %v1921 = vxor.u32 %v1903, 2147483648
        %v1922 = vmul.f32 %v1904, 1.442695
        %v1923 = vpow.pop %v1922
        %v1924 = vmul.f32 %v1905, 1.442695
        %v1925 = vpow.pop %v1924
        %v1926 = vmul.f32 %v1906, 1.442695
        %v1927 = vpow.pop %v1926
        %v1928 = vmul.f32 %v1907, 1.442695
        %v1929 = vpow.pop %v1928
        %v1930 = vmul.f32 %v1908, 1.442695
        %v1931 = vpow.pop %v1930
        %v1932 = vmul.f32 %v1909, 1.442695
        %v1933 = vpow.pop %v1932
        %v1934 = vmul.f32 %v1910, 1.442695
        %v1935 = vpow.pop %v1934
        %v1936 = vmul.f32 %v1911, 1.442695
        %v1937 = vpow.pop %v1936
        %v1938 = vmul.f32 %v1912, 1.442695
        %v1939 = vpow.pop %v1938
        %v1940 = vmul.f32 %v1913, 1.442695
        %v1941 = vpow.pop %v1940
        %v1942 = vmul.f32 %v1914, 1.442695
        %v1943 = vpow.pop %v1942
        %v1944 = vmul.f32 %v1915, 1.442695
        %v1945 = vpow.pop %v1944
        %v1946 = vmul.f32 %v1916, 1.442695
        %v1947 = vpow.pop %v1946
        %v1948 = vmul.f32 %v1917, 1.442695
        %v1949 = vpow.pop %v1948
        %v1950 = vmul.f32 %v1918, 1.442695
        %v1951 = vpow.pop %v1950
        %v1952 = vmul.f32 %v1919, 1.442695
        %v1953 = vpow.pop %v1952
        %v1954 = vmul.f32 %v1920, 1.442695
        %v1955 = vpow.pop %v1954
        %v1956 = vmul.f32 %v1921, 1.442695
        %v1957 = vpow.pop %v1956
        %v1958 = vadd.f32 %v1923, 1.0
        %v1959 = vadd.f32 %v1925, 1.0
        %v1960 = vadd.f32 %v1927, 1.0
        %v1961 = vadd.f32 %v1929, 1.0
        %v1962 = vadd.f32 %v1931, 1.0
        %v1963 = vadd.f32 %v1933, 1.0
        %v1964 = vadd.f32 %v1935, 1.0
        %v1965 = vadd.f32 %v1937, 1.0
        %v1966 = vadd.f32 %v1939, 1.0
        %v1967 = vadd.f32 %v1941, 1.0
        %v1968 = vadd.f32 %v1943, 1.0
        %v1969 = vadd.f32 %v1945, 1.0
        %v1970 = vadd.f32 %v1947, 1.0
        %v1971 = vadd.f32 %v1949, 1.0
        %v1972 = vadd.f32 %v1951, 1.0
        %v1973 = vadd.f32 %v1953, 1.0
        %v1974 = vadd.f32 %v1955, 1.0
        %v1975 = vadd.f32 %v1957, 1.0
        %v1976 = vrcp.pop %v1958
        %v1977 = vmul.f32 1.0, %v1976
        %v1978 = vrcp.pop %v1959
        %v1979 = vmul.f32 1.0, %v1978
        %v1980 = vrcp.pop %v1960
        %v1981 = vmul.f32 1.0, %v1980
        %v1982 = vrcp.pop %v1961
        %v1983 = vmul.f32 1.0, %v1982
        %v1984 = vrcp.pop %v1962
        %v1985 = vmul.f32 1.0, %v1984
        %v1986 = vrcp.pop %v1963
        %v1987 = vmul.f32 1.0, %v1986
        %v1988 = vrcp.pop %v1964
        %v1989 = vmul.f32 1.0, %v1988
        %v1990 = vrcp.pop %v1965
        %v1991 = vmul.f32 1.0, %v1990
        %v1992 = vrcp.pop %v1966
        %v1993 = vmul.f32 1.0, %v1992
        %v1994 = vrcp.pop %v1967
        %v1995 = vmul.f32 1.0, %v1994
        %v1996 = vrcp.pop %v1968
        %v1997 = vmul.f32 1.0, %v1996
        %v1998 = vrcp.pop %v1969
        %v1999 = vmul.f32 1.0, %v1998
        %v2000 = vrcp.pop %v1970
        %v2001 = vmul.f32 1.0, %v2000
        %v2002 = vrcp.pop %v1971
        %v2003 = vmul.f32 1.0, %v2002
        %v2004 = vrcp.pop %v1972
        %v2005 = vmul.f32 1.0, %v2004
        %v2006 = vrcp.pop %v1973
        %v2007 = vmul.f32 1.0, %v2006
        %v2008 = vrcp.pop %v1974
        %v2009 = vmul.f32 1.0, %v2008
        %v2010 = vrcp.pop %v1975
        %v2011 = vmul.f32 1.0, %v2010
        %v2012 = vmul.f32 %v1650, %v1706
        %v2013 = vmul.f32 %v1651, %v1707
        %v2014 = vmul.f32 %v1652, %v1708
        %v2015 = vmul.f32 %v1653, %v1709
        %v2016 = vmul.f32 %v1654, %v1710
        %v2017 = vmul.f32 %v1655, %v1711
        %v2018 = vmul.f32 %v1656, %v1712
        %v2019 = vmul.f32 %v1657, %v1713
        %v2020 = vmul.f32 %v1658, %v1714
        %v2021 = vmul.f32 %v1659, %v1715
        %v2022 = vmul.f32 %v1660, %v1716
        %v2023 = vmul.f32 %v1661, %v1717
        %v2024 = vmul.f32 %v1662, %v1718
        %v2025 = vmul.f32 %v1663, %v1719
        %v2026 = vmul.f32 %v1664, %v1720
        %v2027 = vmul.f32 %v1665, %v1721
        %v2028 = vmul.f32 %v1666, %v1722
        %v2029 = vmul.f32 %v1667, %v1723
        %v2030 = vadd.f32 %v1562, %v2012
        %v2031 = vadd.f32 %v1566, %v2013
        %v2032 = vadd.f32 %v1572, %v2014
        %v2033 = vadd.f32 %v1576, %v2015
        %v2034 = vadd.f32 %v1582, %v2016
        %v2035 = vadd.f32 %v1586, %v2017
        %v2036 = vadd.f32 %v1592, %v2018
        %v2037 = vadd.f32 %v1596, %v2019
        %v2038 = vadd.f32 %v1602, %v2020
        %v2039 = vadd.f32 %v1606, %v2021
        %v2040 = vadd.f32 %v1612, %v2022
        %v2041 = vadd.f32 %v1616, %v2023
        %v2042 = vadd.f32 %v1622, %v2024
        %v2043 = vadd.f32 %v1626, %v2025
        %v2044 = vadd.f32 %v1632, %v2026
        %v2045 = vadd.f32 %v1636, %v2027
        %v2046 = vadd.f32 %v1642, %v2028
        %v2047 = vadd.f32 %v1646, %v2029
        %v2048 = vxor.u32 %v2030, 2147483648
        %v2049 = vxor.u32 %v2031, 2147483648
        %v2050 = vxor.u32 %v2032, 2147483648
        %v2051 = vxor.u32 %v2033, 2147483648
        %v2052 = vxor.u32 %v2034, 2147483648
        %v2053 = vxor.u32 %v2035, 2147483648
        %v2054 = vxor.u32 %v2036, 2147483648
        %v2055 = vxor.u32 %v2037, 2147483648
        %v2056 = vxor.u32 %v2038, 2147483648
        %v2057 = vxor.u32 %v2039, 2147483648
        %v2058 = vxor.u32 %v2040, 2147483648
        %v2059 = vxor.u32 %v2041, 2147483648
        %v2060 = vxor.u32 %v2042, 2147483648
        %v2061 = vxor.u32 %v2043, 2147483648
        %v2062 = vxor.u32 %v2044, 2147483648
        %v2063 = vxor.u32 %v2045, 2147483648
        %v2064 = vxor.u32 %v2046, 2147483648
        %v2065 = vxor.u32 %v2047, 2147483648
        %v2066 = vmul.f32 %v2048, 1.442695
        %v2067 = vpow.pop %v2066
        %v2068 = vmul.f32 %v2049, 1.442695
        %v2069 = vpow.pop %v2068
        %v2070 = vmul.f32 %v2050, 1.442695
        %v2071 = vpow.pop %v2070
        %v2072 = vmul.f32 %v2051, 1.442695
        %v2073 = vpow.pop %v2072
        %v2074 = vmul.f32 %v2052, 1.442695
        %v2075 = vpow.pop %v2074
        %v2076 = vmul.f32 %v2053, 1.442695
        %v2077 = vpow.pop %v2076
        %v2078 = vmul.f32 %v2054, 1.442695
        %v2079 = vpow.pop %v2078
        %v2080 = vmul.f32 %v2055, 1.442695
        %v2081 = vpow.pop %v2080
        %v2082 = vmul.f32 %v2056, 1.442695
        %v2083 = vpow.pop %v2082
        %v2084 = vmul.f32 %v2057, 1.442695
        %v2085 = vpow.pop %v2084
        %v2086 = vmul.f32 %v2058, 1.442695
        %v2087 = vpow.pop %v2086
        %v2088 = vmul.f32 %v2059, 1.442695
        %v2089 = vpow.pop %v2088
        %v2090 = vmul.f32 %v2060, 1.442695
        %v2091 = vpow.pop %v2090
        %v2092 = vmul.f32 %v2061, 1.442695
        %v2093 = vpow.pop %v2092
        %v2094 = vmul.f32 %v2062, 1.442695
        %v2095 = vpow.pop %v2094
        %v2096 = vmul.f32 %v2063, 1.442695
        %v2097 = vpow.pop %v2096
        %v2098 = vmul.f32 %v2064, 1.442695
        %v2099 = vpow.pop %v2098
        %v2100 = vmul.f32 %v2065, 1.442695
        %v2101 = vpow.pop %v2100
        %v2102 = vadd.f32 %v2067, 1.0
        %v2103 = vadd.f32 %v2069, 1.0
        %v2104 = vadd.f32 %v2071, 1.0
        %v2105 = vadd.f32 %v2073, 1.0
        %v2106 = vadd.f32 %v2075, 1.0
        %v2107 = vadd.f32 %v2077, 1.0
        %v2108 = vadd.f32 %v2079, 1.0
        %v2109 = vadd.f32 %v2081, 1.0
        %v2110 = vadd.f32 %v2083, 1.0
        %v2111 = vadd.f32 %v2085, 1.0
        %v2112 = vadd.f32 %v2087, 1.0
        %v2113 = vadd.f32 %v2089, 1.0
        %v2114 = vadd.f32 %v2091, 1.0
        %v2115 = vadd.f32 %v2093, 1.0
        %v2116 = vadd.f32 %v2095, 1.0
        %v2117 = vadd.f32 %v2097, 1.0
        %v2118 = vadd.f32 %v2099, 1.0
        %v2119 = vadd.f32 %v2101, 1.0
        %v2120 = vrcp.pop %v2102
        %v2121 = vmul.f32 1.0, %v2120
        %v2122 = vrcp.pop %v2103
        %v2123 = vmul.f32 1.0, %v2122
        %v2124 = vrcp.pop %v2104
        %v2125 = vmul.f32 1.0, %v2124
        %v2126 = vrcp.pop %v2105
        %v2127 = vmul.f32 1.0, %v2126
        %v2128 = vrcp.pop %v2106
        %v2129 = vmul.f32 1.0, %v2128
        %v2130 = vrcp.pop %v2107
        %v2131 = vmul.f32 1.0, %v2130
        %v2132 = vrcp.pop %v2108
        %v2133 = vmul.f32 1.0, %v2132
        %v2134 = vrcp.pop %v2109
        %v2135 = vmul.f32 1.0, %v2134
        %v2136 = vrcp.pop %v2110
        %v2137 = vmul.f32 1.0, %v2136
        %v2138 = vrcp.pop %v2111
        %v2139 = vmul.f32 1.0, %v2138
        %v2140 = vrcp.pop %v2112
        %v2141 = vmul.f32 1.0, %v2140
        %v2142 = vrcp.pop %v2113
        %v2143 = vmul.f32 1.0, %v2142
        %v2144 = vrcp.pop %v2114
        %v2145 = vmul.f32 1.0, %v2144
        %v2146 = vrcp.pop %v2115
        %v2147 = vmul.f32 1.0, %v2146
        %v2148 = vrcp.pop %v2116
        %v2149 = vmul.f32 1.0, %v2148
        %v2150 = vrcp.pop %v2117
        %v2151 = vmul.f32 1.0, %v2150
        %v2152 = vrcp.pop %v2118
        %v2153 = vmul.f32 1.0, %v2152
        %v2154 = vrcp.pop %v2119
        %v2155 = vmul.f32 1.0, %v2154
        %v2156 = vtanh.pop %v1564
        %v2157 = vtanh.pop %v1568
        %v2158 = vtanh.pop %v1574
        %v2159 = vtanh.pop %v1578
        %v2160 = vtanh.pop %v1584
        %v2161 = vtanh.pop %v1588
        %v2162 = vtanh.pop %v1594
        %v2163 = vtanh.pop %v1598
        %v2164 = vtanh.pop %v1604
        %v2165 = vtanh.pop %v1608
        %v2166 = vtanh.pop %v1614
        %v2167 = vtanh.pop %v1618
        %v2168 = vtanh.pop %v1624
        %v2169 = vtanh.pop %v1628
        %v2170 = vtanh.pop %v1634
        %v2171 = vtanh.pop %v1638
        %v2172 = vtanh.pop %v1644
        %v2173 = vtanh.pop %v1648
        %v2174 = vmul.f32 %v1833, %v1650
        %v2175 = vmul.f32 %v1835, %v1651
        %v2176 = vmul.f32 %v1837, %v1652
        %v2177 = vmul.f32 %v1839, %v1653
        %v2178 = vmul.f32 %v1841, %v1654
        %v2179 = vmul.f32 %v1843, %v1655
        %v2180 = vmul.f32 %v1845, %v1656
        %v2181 = vmul.f32 %v1847, %v1657
        %v2182 = vmul.f32 %v1849, %v1658
        %v2183 = vmul.f32 %v1851, %v1659
        %v2184 = vmul.f32 %v1853, %v1660
        %v2185 = vmul.f32 %v1855, %v1661
        %v2186 = vmul.f32 %v1857, %v1662
        %v2187 = vmul.f32 %v1859, %v1663
        %v2188 = vmul.f32 %v1861, %v1664
        %v2189 = vmul.f32 %v1863, %v1665
        %v2190 = vmul.f32 %v1865, %v1666
        %v2191 = vmul.f32 %v1867, %v1667
        %v2192 = vmul.f32 %v1977, %v2156
        %v2193 = vmul.f32 %v1979, %v2157
        %v2194 = vmul.f32 %v1981, %v2158
        %v2195 = vmul.f32 %v1983, %v2159
        %v2196 = vmul.f32 %v1985, %v2160
        %v2197 = vmul.f32 %v1987, %v2161
        %v2198 = vmul.f32 %v1989, %v2162
        %v2199 = vmul.f32 %v1991, %v2163
        %v2200 = vmul.f32 %v1993, %v2164
        %v2201 = vmul.f32 %v1995, %v2165
        %v2202 = vmul.f32 %v1997, %v2166
        %v2203 = vmul.f32 %v1999, %v2167
        %v2204 = vmul.f32 %v2001, %v2168
        %v2205 = vmul.f32 %v2003, %v2169
        %v2206 = vmul.f32 %v2005, %v2170
        %v2207 = vmul.f32 %v2007, %v2171
        %v2208 = vmul.f32 %v2009, %v2172
        %v2209 = vmul.f32 %v2011, %v2173
        %v2210 = vadd.f32 %v2174, %v2192
        %v2211 = vadd.f32 %v2175, %v2193
        %v2212 = vadd.f32 %v2176, %v2194
        %v2213 = vadd.f32 %v2177, %v2195
        %v2214 = vadd.f32 %v2178, %v2196
        %v2215 = vadd.f32 %v2179, %v2197
        %v2216 = vadd.f32 %v2180, %v2198
        %v2217 = vadd.f32 %v2181, %v2199
        %v2218 = vadd.f32 %v2182, %v2200
        %v2219 = vadd.f32 %v2183, %v2201
        %v2220 = vadd.f32 %v2184, %v2202
        %v2221 = vadd.f32 %v2185, %v2203
        %v2222 = vadd.f32 %v2186, %v2204
        %v2223 = vadd.f32 %v2187, %v2205
        %v2224 = vadd.f32 %v2188, %v2206
        %v2225 = vadd.f32 %v2189, %v2207
        %v2226 = vadd.f32 %v2190, %v2208
        %v2227 = vadd.f32 %v2191, %v2209
        %v2228 = vtanh.pop %v2210
        %v2229 = vtanh.pop %v2211
        %v2230 = vtanh.pop %v2212
        %v2231 = vtanh.pop %v2213
        %v2232 = vtanh.pop %v2214
        %v2233 = vtanh.pop %v2215
        %v2234 = vtanh.pop %v2216
        %v2235 = vtanh.pop %v2217
        %v2236 = vtanh.pop %v2218
        %v2237 = vtanh.pop %v2219
        %v2238 = vtanh.pop %v2220
        %v2239 = vtanh.pop %v2221
        %v2240 = vtanh.pop %v2222
        %v2241 = vtanh.pop %v2223
        %v2242 = vtanh.pop %v2224
        %v2243 = vtanh.pop %v2225
        %v2244 = vtanh.pop %v2226
        %v2245 = vtanh.pop %v2227
        %v2246 = vmul.f32 %v2121, %v2228
        %v2247 = vmul.f32 %v2123, %v2229
        %v2248 = vmul.f32 %v2125, %v2230
        %v2249 = vmul.f32 %v2127, %v2231
        %v2250 = vmul.f32 %v2129, %v2232
        %v2251 = vmul.f32 %v2131, %v2233
        %v2252 = vmul.f32 %v2133, %v2234
        %v2253 = vmul.f32 %v2135, %v2235
        %v2254 = vmul.f32 %v2137, %v2236
        %v2255 = vmul.f32 %v2139, %v2237
        %v2256 = vmul.f32 %v2141, %v2238
        %v2257 = vmul.f32 %v2143, %v2239
        %v2258 = vmul.f32 %v2145, %v2240
        %v2259 = vmul.f32 %v2147, %v2241
        %v2260 = vmul.f32 %v2149, %v2242
        %v2261 = vmul.f32 %v2151, %v2243
        %v2262 = vmul.f32 %v2153, %v2244
        %v2263 = vmul.f32 %v2155, %v2245
        %2264 = vst [vmem:[%s356] sm:$0xff] %v2246
        %2265 = vst [vmem:[%s356 + $0x8] sm:$0xff] %v2247
        %2266 = vst [vmem:[%s356 + $0x10] sm:$0xff] %v2248
        %2267 = vst [vmem:[%s356 + $0x18] sm:$0xff] %v2249
        %2268 = vst [vmem:[%s356 + $0x20] sm:$0xff] %v2250
        %2269 = vst [vmem:[%s356 + $0x28] sm:$0xff] %v2251
        %2270 = vst [vmem:[%s356 + $0x30] sm:$0xff] %v2252
        %2271 = vst [vmem:[%s356 + $0x38] sm:$0xff] %v2253
        %2272 = vst [vmem:[%s356 + $0x40] sm:$0xff] %v2254
        %2273 = vst [vmem:[%s356 + $0x48] sm:$0xff] %v2255
        %2274 = vst [vmem:[%s356 + $0x50] sm:$0xff] %v2256
        %2275 = vst [vmem:[%s356 + $0x58] sm:$0xff] %v2257
        %2276 = vst [vmem:[%s356 + $0x60] sm:$0xff] %v2258
        %2277 = vst [vmem:[%s356 + $0x68] sm:$0xff] %v2259
        %2278 = vst [vmem:[%s356 + $0x70] sm:$0xff] %v2260
        %2279 = vst [vmem:[%s356 + $0x78] sm:$0xff] %v2261
        %2280 = vst [vmem:[%s356 + $0x80] sm:$0xff] %v2262
        %2281 = vst [vmem:[%s356 + $0x88] sm:$0xff] %v2263
        %2282 = vst [vmem:[%s363] sm:$0xff] %v2210
        %2283 = vst [vmem:[%s363 + $0x8] sm:$0xff] %v2211
        %2284 = vst [vmem:[%s363 + $0x10] sm:$0xff] %v2212
        %2285 = vst [vmem:[%s363 + $0x18] sm:$0xff] %v2213
        %2286 = vst [vmem:[%s363 + $0x20] sm:$0xff] %v2214
        %2287 = vst [vmem:[%s363 + $0x28] sm:$0xff] %v2215
        %2288 = vst [vmem:[%s363 + $0x30] sm:$0xff] %v2216
        %2289 = vst [vmem:[%s363 + $0x38] sm:$0xff] %v2217
        %2290 = vst [vmem:[%s363 + $0x40] sm:$0xff] %v2218
        %2291 = vst [vmem:[%s363 + $0x48] sm:$0xff] %v2219
        %2292 = vst [vmem:[%s363 + $0x50] sm:$0xff] %v2220
        %2293 = vst [vmem:[%s363 + $0x58] sm:$0xff] %v2221
        %2294 = vst [vmem:[%s363 + $0x60] sm:$0xff] %v2222
        %2295 = vst [vmem:[%s363 + $0x68] sm:$0xff] %v2223
        %2296 = vst [vmem:[%s363 + $0x70] sm:$0xff] %v2224
        %2297 = vst [vmem:[%s363 + $0x78] sm:$0xff] %v2225
        %2298 = vst [vmem:[%s363 + $0x80] sm:$0xff] %v2226
        %2299 = vst [vmem:[%s363 + $0x88] sm:$0xff] %v2227
        %s2300 = sand.u32 %s172, 1
        %s2301 = scalar_lea.sflag [#allocation4], %s2300
        %s2302 = sand.u32 %s172, 1
        %s2303 = smul.addr %s2302, 144
        %s2304 = scalar_lea.vmem [#allocation8], %s2303
        %s2305 = sand.u32 %s200, 1
        %s2306 = scalar_lea.sflag [#allocation10], %s2305
        %s2307 = sand.u32 %s200, 1
        %s2308 = smul.addr %s2307, 144
        %s2309 = scalar_lea.vmem [#allocation9], %s2308
        // Predicated region
        $region53: #{tpu_custom_call.1} parent=39 // pred_check
          %p2310 = pneg %p182
        $region54: #{tpu_custom_call.1} parent=39 // pred_check_branch
          %2312 = sbr.rel (%p2310) target = $region56
        $region55: #{tpu_custom_call.1} parent=39 // pred_region
          %s2313 = smul.u32 18, %s31
          %s2315 = ssub.s32 2304, 2304
          %2316 = vsyncadd %s2301, %s2315
          %s2317 = smul.addr %s30, 18
          %s2318 = sadd.s32 %s2313, %s2317
          %s2319 = smul.addr %s2318, 128
          %s2320 = scalar_lea.hbm %s5, %s2319
          %s2321 = sshll.u32 %s2304, 4
          %s2322 = int_to_ptr.vmem [resolvable:$true] %s2321
          %2327 = dma.vmem_to_hbm [thread:$0]  %s2322, 2304, %s2320, %s2301, 128, 128, 8
        $region56: #{tpu_custom_call.1} parent=39 // pred_fallthru
          _
        // Predicated region
        $region57: #{tpu_custom_call.1} parent=39 // pred_check
          %p2328 = pneg %p210
        $region58: #{tpu_custom_call.1} parent=39 // pred_check_branch
          %2330 = sbr.rel (%p2328) target = $region60
        $region59: #{tpu_custom_call.1} parent=39 // pred_region
          %s2331 = smul.u32 18, %s31
          %s2333 = ssub.s32 2304, 2304
          %2334 = vsyncadd %s2306, %s2333
          %s2335 = smul.addr %s30, 18
          %s2336 = sadd.s32 %s2331, %s2335
          %s2337 = smul.addr %s2336, 128
          %s2338 = scalar_lea.hbm %s6, %s2337
          %s2339 = sshll.u32 %s2309, 4
          %s2340 = int_to_ptr.vmem [resolvable:$true] %s2339
          %2345 = dma.vmem_to_hbm [thread:$0]  %s2340, 2304, %s2338, %s2306, 128, 128, 8
        $region60: #{tpu_custom_call.1} parent=39 // pred_fallthru
          _
      $region40: #{tpu_custom_call.1} parent=5 // pred_fallthru
        _
      %p2346 = scmp.le.s32.totalorder 2, %s21
      // Predicated region
      $region61: #{tpu_custom_call.1} parent=5 // pred_check
        %p2347 = pneg %p2346
      $region62: #{tpu_custom_call.1} parent=5 // pred_check_branch
        %2349 = sbr.rel (%p2347) target = $region64
      $region63: #{tpu_custom_call.1} parent=5 // pred_region
        %s2350 = ssub.s32 %s21, 2
        // Predicated region
        $region65: #{tpu_custom_call.1} parent=63 // pred_check
          %p2351 = pneg %p188
        $region66: #{tpu_custom_call.1} parent=63 // pred_check_branch
          %2353 = sbr.rel (%p2351) target = $region68
        $region67: #{tpu_custom_call.1} parent=63 // pred_region
          %s2354 = sand.u32 %s173, 1
          %s2355 = scalar_lea.sflag [#allocation4], %s2354
          %s2356 = sand.u32 %s173, 1
          %s2357 = smul.addr %s2356, 144
          %s2358 = scalar_lea.vmem [#allocation8], %s2357
          %2359 = dma.done %s2355, 2304
        $region68: #{tpu_custom_call.1} parent=63 // pred_fallthru
          _
        // Predicated region
        $region69: #{tpu_custom_call.1} parent=63 // pred_check
          %p2360 = pneg %p216
        $region70: #{tpu_custom_call.1} parent=63 // pred_check_branch
          %2362 = sbr.rel (%p2360) target = $region72
        $region71: #{tpu_custom_call.1} parent=63 // pred_region
          %s2363 = sand.u32 %s201, 1
          %s2364 = scalar_lea.sflag [#allocation10], %s2363
          %s2365 = sand.u32 %s201, 1
          %s2366 = smul.addr %s2365, 144
          %s2367 = scalar_lea.vmem [#allocation9], %s2366
          %2368 = dma.done %s2364, 2304
        $region72: #{tpu_custom_call.1} parent=63 // pred_fallthru
          _
      $region64: #{tpu_custom_call.1} parent=5 // pred_fallthru
        _
    $region6: #{tpu_custom_call.1} parent=1 // loop_footer
      %s25 = sadd.s32 1, %s21
    $region7: #{tpu_custom_call.1} parent=1 // loop_footer_branch
      %20 = sbr.rel target = $region3
    $region8: #{tpu_custom_call.1} parent=1 // loop_exit
      _
    %2369 = vsyncpa [#allocation3], 1
    %s2370 = scalar_lea.sflag [#allocation3], 1
    %2371 = vsyncpa %s2370, 1
    %2372 = vsyncpa [#allocation6], 1
    %2373 = vsyncpa [#allocation4], 1
    %s2374 = scalar_lea.sflag [#allocation4], 1
    %2375 = vsyncpa %s2374, 1
    %2376 = vsyncpa [#allocation10], 1
    %s2377 = scalar_lea.sflag [#allocation10], 1
    %2378 = vsyncpa %s2377, 1

</llo_original>
